<compile_context>
chip_gen: v6e
topology: v6e:2x2x1
jax: 0.10.0
libtpu: 0.0.40
codegen_flags: <defaults>
</compile_context>

<pallas_src>
import jax
import jax.numpy as jnp
import numpy as np
from jax.experimental import pallas as pl
from jax.experimental.pallas import tpu as pltpu

K = 3
EPS = 1e-5


# --------------------------------- kernel ---------------------------------

def feature_decoder_kernel(x_ref, w1b_ref, w2b_ref, sdn_ref, sup_ref,
                           gmap_ref, gtmap_ref, g1_ref, b1_ref, g2_ref, b2_ref,
                           out_ref):
    # x_ref   : (N, H+2, (W+2)*Cin)  f32, H- and W-padded input, lanes=(jp,ci)
    # w1b_ref : (3, (W+2)*Cin, 2*W*Cout) bf16  conv1 band | residual band
    # w2b_ref : (W*Cout, 3*W*Cout)   bf16  conv2 bands for kh=0,1,2 (concat)
    # sdn/sup : (N*H, N*H)           f32   exact 0/1 row-shift matrices
    # gmap    : (W*Cout, Cout)       f32   column -> channel reduce map
    # gtmap   : (Cout, W*Cout)       f32   channel -> column broadcast map
    # g*/b*   : (1, W*Cout)          f32   BN gamma/beta tiled per column
    # out_ref : (N*H, W*Cout)        f32   lane-dense output slab
    N, Hp, _ = x_ref.shape
    H = Hp - 2
    NH, Q = out_ref.shape
    Cout = gmap_ref.shape[1]
    W = Q // Cout
    inv_n = 1.0 / float(NH * W)              # 1 / (N*H*W) per-channel count

    x = x_ref[...]                           # (N, H+2, (W+2)*Cin) f32

    # ---- conv1 (+ fused residual): 3 banded MXU matmuls, one per kh ----
    acc = jnp.zeros((NH, 2 * Q), jnp.float32)
    for kh in range(3):
        lhs = x[:, kh:kh + H, :].reshape(NH, x.shape[-1]).astype(jnp.bfloat16)
        acc = acc + jnp.dot(lhs, w1b_ref[kh],
                            preferred_element_type=jnp.float32)
    conv1 = acc[:, :Q]                       # (NH, Q)
    residual = acc[:, Q:]                    # (NH, Q)

    # ---- BN1: single-pass batch stats (sum / sum-of-squares) + ReLU ----
    colsum = jnp.sum(conv1, axis=0, keepdims=True)            # (1, Q)
    colsq = jnp.sum(conv1 * conv1, axis=0, keepdims=True)
    mean_c = jnp.dot(colsum, gmap_ref[...],
                     preferred_element_type=jnp.float32) * inv_n      # (1, C)
    ex2_c = jnp.dot(colsq, gmap_ref[...],
                    preferred_element_type=jnp.float32) * inv_n
    var_c = ex2_c - mean_c * mean_c
    scale_c = jax.lax.rsqrt(var_c + EPS)
    mean_b = jnp.dot(mean_c, gtmap_ref[...],
                     preferred_element_type=jnp.float32)               # (1, Q)
    scale_b = jnp.dot(scale_c, gtmap_ref[...],
                      preferred_element_type=jnp.float32)
    h1 = jnp.maximum((conv1 - mean_b) * scale_b * g1_ref[...] + b1_ref[...],
                     0.0)

    # ---- conv2: one matmul against the 3 concatenated kh bands, then the
    # kh=0 / kh=2 terms are row-shifted (with image-boundary zeroing = the H
    # padding) by exact 0/1 matrices on the MXU. No scratch, no re-pad. ----
    t = jnp.dot(h1.astype(jnp.bfloat16), w2b_ref[...],
                preferred_element_type=jnp.float32)            # (NH, 3Q)
    acc2 = (t[:, Q:2 * Q]
            + jnp.dot(sdn_ref[...], t[:, :Q],
                      preferred_element_type=jnp.float32)
            + jnp.dot(sup_ref[...], t[:, 2 * Q:],
                      preferred_element_type=jnp.float32))

    # ---- BN2 + residual add + ReLU ----
    colsum2 = jnp.sum(acc2, axis=0, keepdims=True)
    colsq2 = jnp.sum(acc2 * acc2, axis=0, keepdims=True)
    mean2_c = jnp.dot(colsum2, gmap_ref[...],
                      preferred_element_type=jnp.float32) * inv_n
    ex2_2c = jnp.dot(colsq2, gmap_ref[...],
                     preferred_element_type=jnp.float32) * inv_n
    var2_c = ex2_2c - mean2_c * mean2_c
    scale2_c = jax.lax.rsqrt(var2_c + EPS)
    mean2_b = jnp.dot(mean2_c, gtmap_ref[...],
                      preferred_element_type=jnp.float32)
    scale2_b = jnp.dot(scale2_c, gtmap_ref[...],
                       preferred_element_type=jnp.float32)
    h2 = (acc2 - mean2_b) * scale2_b * g2_ref[...] + b2_ref[...]

    out_ref[...] = jnp.maximum(h2 + residual, 0.0).astype(out_ref.dtype)


# --------------------------- operand preparation ---------------------------

def pack_operands(params, N, H, W):
    """Fold conv weights into block-banded matrices (wrapper-side layout
    plumbing so the kernel does a handful of big lane-dense matmuls)."""
    w1, w2, wres, g1, b1, g2, b2 = params
    Cin, Cout = w1.shape[2], w1.shape[3]
    Q = W * Cout
    f32 = jnp.float32

    kw = jnp.arange(3)
    j = jnp.arange(W)

    # conv1 band: row index jp*Cin+ci over the W-padded input columns,
    # output column j*Cout+co; W zero-padding is built into the band.
    jp = jnp.arange(W + 2)
    ind1 = (jp[None, :, None] == (j[None, None, :] + kw[:, None, None])
            ).astype(f32)                                   # (3, W+2, W)
    band1 = jnp.einsum('kpj,hkio->hpijo', ind1, w1
                       ).reshape(3, (W + 2) * Cin, Q)
    # residual (1x1 conv) as Q extra output columns on the center (kh=1) band
    resb = jnp.einsum('pj,io->pijo', ind1[1], wres
                      ).reshape((W + 2) * Cin, Q)
    res3 = jnp.stack([jnp.zeros_like(resb), resb, jnp.zeros_like(resb)],
                     axis=0)
    w1band = jnp.concatenate([band1, res3], axis=-1).astype(jnp.bfloat16)

    # conv2 band: unpadded W columns in/out; out-of-range blocks are simply
    # absent (== zero W-padding). Three kh bands concatenated along columns.
    ji = jnp.arange(W)
    ind2 = (ji[None, :, None] == (j[None, None, :] + kw[:, None, None] - 1)
            ).astype(f32)                                   # (3, W, W)
    band2 = jnp.einsum('kpj,hkio->hpijo', ind2, w2).reshape(3, Q, Q)
    w2band = jnp.concatenate([band2[0], band2[1], band2[2]],
                             axis=-1).astype(jnp.bfloat16)  # (Q, 3Q)

    # channel reduce / broadcast maps and per-column BN affine params
    gmap = jnp.tile(jnp.eye(Cout, dtype=f32), (W, 1))       # (Q, Cout)
    gtmap = gmap.T                                          # (Cout, Q)
    g1r = jnp.tile(g1, W).reshape(1, Q).astype(f32)
    b1r = jnp.tile(b1, W).reshape(1, Q).astype(f32)
    g2r = jnp.tile(g2, W).reshape(1, Q).astype(f32)
    b2r = jnp.tile(b2, W).reshape(1, Q).astype(f32)

    # exact 0/1 row-shift matrices (H zero-padding of conv2)
    NH = N * H
    r = jnp.arange(NH)
    sdn = ((r[:, None] - 1 == r[None, :]) &
           ((r[:, None] % H) != 0)).astype(f32)
    sup = ((r[:, None] + 1 == r[None, :]) &
           ((r[:, None] % H) != (H - 1))).astype(f32)

    return w1band, w2band, sdn, sup, gmap, gtmap, g1r, b1r, g2r, b2r


def feature_decoder(x_nchw, params):
    """x_nchw: (N, Cin, H, W) float32  ->  (N, Cout, H, W) float32."""
    N, Cin, H, W = x_nchw.shape
    Cout = params[0].shape[-1]
    Q = W * Cout
    ops = pack_operands(params, N, H, W)

    x = jnp.transpose(x_nchw, (0, 2, 3, 1))                      # NHWC
    xpad = jnp.pad(x, ((0, 0), (1, 1), (1, 1), (0, 0)))          # pad=1
    x3 = xpad.reshape(N, H + 2, (W + 2) * Cin).astype(jnp.float32)

    vmem = pl.BlockSpec(memory_space=pltpu.MemorySpace.VMEM)
    out2d = pl.pallas_call(
        feature_decoder_kernel,
        out_shape=jax.ShapeDtypeStruct((N * H, Q), x_nchw.dtype),
        in_specs=[vmem] * 11,
        out_specs=vmem,
        compiler_params=pltpu.CompilerParams(
            # above the 32 MiB scoped default, below v7x's 64 MiB physical
            vmem_limit_bytes=48 * 1024 * 1024),
    )(x3, *ops)

    out = out2d.reshape(N, H, W, Cout)
    return jnp.transpose(out, (0, 3, 1, 2))                      # NCHW


# ------------------------- parameter construction -------------------------

def xavier_uniform(key, shape, fan_in, fan_out):
    bound = float(np.sqrt(6.0 / (fan_in + fan_out)))
    return jax.random.uniform(key, shape, jnp.float32, -bound, bound)


def init_params(key, in_feature, out_feature, k=3):
    k1, k2, k3 = jax.random.split(key, 3)
    # conv weights generated directly in HWIO layout (k, k, Cin, Cout)
    w1 = xavier_uniform(k1, (k, k, in_feature, out_feature),
                        in_feature * k * k, out_feature * k * k)
    w2 = xavier_uniform(k2, (k, k, out_feature, out_feature),
                        out_feature * k * k, out_feature * k * k)
    wres = xavier_uniform(k3, (in_feature, out_feature),
                          in_feature, out_feature)
    g1 = jnp.ones((out_feature,), jnp.float32)
    b1 = jnp.zeros((out_feature,), jnp.float32)
    g2 = jnp.ones((out_feature,), jnp.float32)
    b2 = jnp.zeros((out_feature,), jnp.float32)
    return (w1, w2, wres, g1, b1, g2, b2)


# ------------------------- pure-JAX reference -------------------------

def feature_decoder_ref(x_nchw, params):
    w1, w2, wres, g1, b1, g2, b2 = params
    x = jnp.transpose(x_nchw, (0, 2, 3, 1))
    dn = ('NHWC', 'HWIO', 'NHWC')

    def conv(inp, w, pad):
        return jax.lax.conv_general_dilated(
            inp, w, (1, 1), [(pad, pad), (pad, pad)], dimension_numbers=dn)

    def bn(inp, g, b):
        m = jnp.mean(inp, axis=(0, 1, 2), keepdims=True)
        v = jnp.mean((inp - m) ** 2, axis=(0, 1, 2), keepdims=True)
        return (inp - m) * jax.lax.rsqrt(v + EPS) * g + b

    res = conv(x, wres.reshape(1, 1, *wres.shape), 0)
    h = jax.nn.relu(bn(conv(x, w1, 1), g1, b1))
    h = bn(conv(h, w2, 1), g2, b2)
    out = jax.nn.relu(h + res)
    return jnp.transpose(out, (0, 3, 1, 2))


if __name__ == "__main__":
    key = jax.random.PRNGKey(0)
    kx, kp = jax.random.split(key)

    N, Cin, Cout, H, W = 2, 4, 8, 16, 16
    x = jax.random.normal(kx, (N, Cin, H, W), jnp.float32)
    params = init_params(kp, Cin, Cout, K)

    out = jax.block_until_ready(feature_decoder(x, params))
    ref = jax.block_until_ready(feature_decoder_ref(x, params))

    assert out.shape == (N, Cout, H, W), out.shape
    # tolerance accounts for bf16 MXU inputs (reference runs in f32)
    np.testing.assert_allclose(np.asarray(out), np.asarray(ref),
                               rtol=2e-2, atol=2e-2)
    print("KERNEL_OK")
</pallas_src>

<mosaic_0001>
module attributes {stable_mosaic.version = 11 : i64} {
  func.func @feature_decoder_kernel(%arg0: memref<2x18x72xf32, #tpu.memory_space<vmem>>, %arg1: memref<3x72x256xbf16, #tpu.memory_space<vmem>>, %arg2: memref<128x384xbf16, #tpu.memory_space<vmem>>, %arg3: memref<32x32xf32, #tpu.memory_space<vmem>>, %arg4: memref<32x32xf32, #tpu.memory_space<vmem>>, %arg5: memref<128x8xf32, #tpu.memory_space<vmem>>, %arg6: memref<8x128xf32, #tpu.memory_space<vmem>>, %arg7: memref<1x128xf32, #tpu.memory_space<vmem>>, %arg8: memref<1x128xf32, #tpu.memory_space<vmem>>, %arg9: memref<1x128xf32, #tpu.memory_space<vmem>>, %arg10: memref<1x128xf32, #tpu.memory_space<vmem>>, %arg11: memref<32x128xf32, #tpu.memory_space<vmem>>) attributes {dimension_semantics = [], scalar_prefetch = 0 : i64, scratch_operands = 0 : i64, tpu.core_type = #tpu.core_type<tc>} {
    %c0 = arith.constant 0 : index
    %c0_0 = arith.constant 0 : index
    %c0_1 = arith.constant 0 : index
    %0 = vector.load %arg0[%c0, %c0_0, %c0_1] : memref<2x18x72xf32, #tpu.memory_space<vmem>>, vector<2x18x72xf32>
    %cst = arith.constant 0.000000e+00 : f32
    %1 = vector.broadcast %cst : f32 to vector<32x256xf32>
    %2 = vector.extract_strided_slice %0 {offsets = [0, 0, 0], sizes = [2, 16, 72], strides = [1, 1, 1]} : vector<2x18x72xf32> to vector<2x16x72xf32>
    %3 = vector.shape_cast %2 : vector<2x16x72xf32> to vector<32x72xf32>
    %4 = arith.truncf %3 : vector<32x72xf32> to vector<32x72xbf16>
    %c0_2 = arith.constant 0 : index
    %c0_3 = arith.constant 0 : index
    %c0_4 = arith.constant 0 : index
    %5 = vector.load %arg1[%c0_2, %c0_3, %c0_4] : memref<3x72x256xbf16, #tpu.memory_space<vmem>>, vector<1x72x256xbf16>
    %6 = vector.shape_cast %5 : vector<1x72x256xbf16> to vector<72x256xbf16>
    %cst_5 = arith.constant dense<0.000000e+00> : vector<32x256xf32>
    %7 = tpu.matmul %4, %6, %cst_5 {dimension_numbers = #tpu.dot_dimension_numbers<[1], [0], [0], [1], [0, 0, 1, 1], [], []>} : vector<32x72xbf16>, vector<72x256xbf16>, vector<32x256xf32> -> vector<32x256xf32>
    %8 = arith.addf %1, %7 : vector<32x256xf32>
    %9 = vector.extract_strided_slice %0 {offsets = [0, 1, 0], sizes = [2, 16, 72], strides = [1, 1, 1]} : vector<2x18x72xf32> to vector<2x16x72xf32>
    %10 = vector.shape_cast %9 : vector<2x16x72xf32> to vector<32x72xf32>
    %11 = arith.truncf %10 : vector<32x72xf32> to vector<32x72xbf16>
    %c1 = arith.constant 1 : index
    %c0_6 = arith.constant 0 : index
    %c0_7 = arith.constant 0 : index
    %12 = vector.load %arg1[%c1, %c0_6, %c0_7] : memref<3x72x256xbf16, #tpu.memory_space<vmem>>, vector<1x72x256xbf16>
    %13 = vector.shape_cast %12 : vector<1x72x256xbf16> to vector<72x256xbf16>
    %cst_8 = arith.constant dense<0.000000e+00> : vector<32x256xf32>
    %14 = tpu.matmul %11, %13, %cst_8 {dimension_numbers = #tpu.dot_dimension_numbers<[1], [0], [0], [1], [0, 0, 1, 1], [], []>} : vector<32x72xbf16>, vector<72x256xbf16>, vector<32x256xf32> -> vector<32x256xf32>
    %15 = arith.addf %8, %14 : vector<32x256xf32>
    %16 = vector.extract_strided_slice %0 {offsets = [0, 2, 0], sizes = [2, 16, 72], strides = [1, 1, 1]} : vector<2x18x72xf32> to vector<2x16x72xf32>
    %17 = vector.shape_cast %16 : vector<2x16x72xf32> to vector<32x72xf32>
    %18 = arith.truncf %17 : vector<32x72xf32> to vector<32x72xbf16>
    %c2 = arith.constant 2 : index
    %c0_9 = arith.constant 0 : index
    %c0_10 = arith.constant 0 : index
    %19 = vector.load %arg1[%c2, %c0_9, %c0_10] : memref<3x72x256xbf16, #tpu.memory_space<vmem>>, vector<1x72x256xbf16>
    %20 = vector.shape_cast %19 : vector<1x72x256xbf16> to vector<72x256xbf16>
    %cst_11 = arith.constant dense<0.000000e+00> : vector<32x256xf32>
    %21 = tpu.matmul %18, %20, %cst_11 {dimension_numbers = #tpu.dot_dimension_numbers<[1], [0], [0], [1], [0, 0, 1, 1], [], []>} : vector<32x72xbf16>, vector<72x256xbf16>, vector<32x256xf32> -> vector<32x256xf32>
    %22 = arith.addf %15, %21 : vector<32x256xf32>
    %23 = vector.extract_strided_slice %22 {offsets = [0, 0], sizes = [32, 128], strides = [1, 1]} : vector<32x256xf32> to vector<32x128xf32>
    %24 = vector.extract_strided_slice %22 {offsets = [0, 128], sizes = [32, 128], strides = [1, 1]} : vector<32x256xf32> to vector<32x128xf32>
    %cst_12 = arith.constant dense<0.000000e+00> : vector<128xf32>
    %25 = vector.multi_reduction <add>, %23, %cst_12 [0] : vector<32x128xf32> to vector<128xf32>
    %26 = vector.shape_cast %25 : vector<128xf32> to vector<1x128xf32>
    %27 = arith.mulf %23, %23 : vector<32x128xf32>
    %cst_13 = arith.constant dense<0.000000e+00> : vector<128xf32>
    %28 = vector.multi_reduction <add>, %27, %cst_13 [0] : vector<32x128xf32> to vector<128xf32>
    %29 = vector.shape_cast %28 : vector<128xf32> to vector<1x128xf32>
    %c0_14 = arith.constant 0 : index
    %c0_15 = arith.constant 0 : index
    %30 = vector.load %arg5[%c0_14, %c0_15] : memref<128x8xf32, #tpu.memory_space<vmem>>, vector<128x8xf32>
    %cst_16 = arith.constant dense<0.000000e+00> : vector<1x8xf32>
    %31 = tpu.matmul %26, %30, %cst_16 {dimension_numbers = #tpu.dot_dimension_numbers<[1], [0], [0], [1], [0, 0, 1, 1], [], []>} : vector<1x128xf32>, vector<128x8xf32>, vector<1x8xf32> -> vector<1x8xf32>
    %cst_17 = arith.constant 0.001953125 : f32
    %32 = vector.broadcast %cst_17 : f32 to vector<1x8xf32>
    %33 = arith.mulf %31, %32 : vector<1x8xf32>
    %c0_18 = arith.constant 0 : index
    %c0_19 = arith.constant 0 : index
    %34 = vector.load %arg5[%c0_18, %c0_19] : memref<128x8xf32, #tpu.memory_space<vmem>>, vector<128x8xf32>
    %cst_20 = arith.constant dense<0.000000e+00> : vector<1x8xf32>
    %35 = tpu.matmul %29, %34, %cst_20 {dimension_numbers = #tpu.dot_dimension_numbers<[1], [0], [0], [1], [0, 0, 1, 1], [], []>} : vector<1x128xf32>, vector<128x8xf32>, vector<1x8xf32> -> vector<1x8xf32>
    %cst_21 = arith.constant 0.001953125 : f32
    %36 = vector.broadcast %cst_21 : f32 to vector<1x8xf32>
    %37 = arith.mulf %35, %36 : vector<1x8xf32>
    %38 = arith.mulf %33, %33 : vector<1x8xf32>
    %39 = arith.subf %37, %38 : vector<1x8xf32>
    %cst_22 = arith.constant 9.99999974E-6 : f32
    %40 = vector.broadcast %cst_22 : f32 to vector<1x8xf32>
    %41 = arith.addf %39, %40 : vector<1x8xf32>
    %42 = math.rsqrt %41 : vector<1x8xf32>
    %c0_23 = arith.constant 0 : index
    %c0_24 = arith.constant 0 : index
    %43 = vector.load %arg6[%c0_23, %c0_24] : memref<8x128xf32, #tpu.memory_space<vmem>>, vector<8x128xf32>
    %cst_25 = arith.constant dense<0.000000e+00> : vector<1x128xf32>
    %44 = tpu.matmul %33, %43, %cst_25 {dimension_numbers = #tpu.dot_dimension_numbers<[1], [0], [0], [1], [0, 0, 1, 1], [], []>} : vector<1x8xf32>, vector<8x128xf32>, vector<1x128xf32> -> vector<1x128xf32>
    %c0_26 = arith.constant 0 : index
    %c0_27 = arith.constant 0 : index
    %45 = vector.load %arg6[%c0_26, %c0_27] : memref<8x128xf32, #tpu.memory_space<vmem>>, vector<8x128xf32>
    %cst_28 = arith.constant dense<0.000000e+00> : vector<1x128xf32>
    %46 = tpu.matmul %42, %45, %cst_28 {dimension_numbers = #tpu.dot_dimension_numbers<[1], [0], [0], [1], [0, 0, 1, 1], [], []>} : vector<1x8xf32>, vector<8x128xf32>, vector<1x128xf32> -> vector<1x128xf32>
    %47 = vector.broadcast %44 : vector<1x128xf32> to vector<32x128xf32>
    %48 = arith.subf %23, %47 : vector<32x128xf32>
    %49 = vector.broadcast %46 : vector<1x128xf32> to vector<32x128xf32>
    %50 = arith.mulf %48, %49 : vector<32x128xf32>
    %c0_29 = arith.constant 0 : index
    %c0_30 = arith.constant 0 : index
    %51 = vector.load %arg7[%c0_29, %c0_30] : memref<1x128xf32, #tpu.memory_space<vmem>>, vector<1x128xf32>
    %52 = vector.broadcast %51 : vector<1x128xf32> to vector<32x128xf32>
    %53 = arith.mulf %50, %52 : vector<32x128xf32>
    %c0_31 = arith.constant 0 : index
    %c0_32 = arith.constant 0 : index
    %54 = vector.load %arg8[%c0_31, %c0_32] : memref<1x128xf32, #tpu.memory_space<vmem>>, vector<1x128xf32>
    %55 = vector.broadcast %54 : vector<1x128xf32> to vector<32x128xf32>
    %56 = arith.addf %53, %55 : vector<32x128xf32>
    %cst_33 = arith.constant 0.000000e+00 : f32
    %57 = vector.broadcast %cst_33 : f32 to vector<32x128xf32>
    %58 = arith.maximumf %56, %57 : vector<32x128xf32>
    %59 = arith.truncf %58 : vector<32x128xf32> to vector<32x128xbf16>
    %c0_34 = arith.constant 0 : index
    %c0_35 = arith.constant 0 : index
    %60 = vector.load %arg2[%c0_34, %c0_35] : memref<128x384xbf16, #tpu.memory_space<vmem>>, vector<128x384xbf16>
    %cst_36 = arith.constant dense<0.000000e+00> : vector<32x384xf32>
    %61 = tpu.matmul %59, %60, %cst_36 {dimension_numbers = #tpu.dot_dimension_numbers<[1], [0], [0], [1], [0, 0, 1, 1], [], []>} : vector<32x128xbf16>, vector<128x384xbf16>, vector<32x384xf32> -> vector<32x384xf32>
    %62 = vector.extract_strided_slice %61 {offsets = [0, 128], sizes = [32, 128], strides = [1, 1]} : vector<32x384xf32> to vector<32x128xf32>
    %c0_37 = arith.constant 0 : index
    %c0_38 = arith.constant 0 : index
    %63 = vector.load %arg3[%c0_37, %c0_38] : memref<32x32xf32, #tpu.memory_space<vmem>>, vector<32x32xf32>
    %64 = vector.extract_strided_slice %61 {offsets = [0, 0], sizes = [32, 128], strides = [1, 1]} : vector<32x384xf32> to vector<32x128xf32>
    %cst_39 = arith.constant dense<0.000000e+00> : vector<32x128xf32>
    %65 = tpu.matmul %63, %64, %cst_39 {dimension_numbers = #tpu.dot_dimension_numbers<[1], [0], [0], [1], [0, 0, 1, 1], [], []>} : vector<32x32xf32>, vector<32x128xf32>, vector<32x128xf32> -> vector<32x128xf32>
    %66 = arith.addf %62, %65 : vector<32x128xf32>
    %c0_40 = arith.constant 0 : index
    %c0_41 = arith.constant 0 : index
    %67 = vector.load %arg4[%c0_40, %c0_41] : memref<32x32xf32, #tpu.memory_space<vmem>>, vector<32x32xf32>
    %68 = vector.extract_strided_slice %61 {offsets = [0, 256], sizes = [32, 128], strides = [1, 1]} : vector<32x384xf32> to vector<32x128xf32>
    %cst_42 = arith.constant dense<0.000000e+00> : vector<32x128xf32>
    %69 = tpu.matmul %67, %68, %cst_42 {dimension_numbers = #tpu.dot_dimension_numbers<[1], [0], [0], [1], [0, 0, 1, 1], [], []>} : vector<32x32xf32>, vector<32x128xf32>, vector<32x128xf32> -> vector<32x128xf32>
    %70 = arith.addf %66, %69 : vector<32x128xf32>
    %cst_43 = arith.constant dense<0.000000e+00> : vector<128xf32>
    %71 = vector.multi_reduction <add>, %70, %cst_43 [0] : vector<32x128xf32> to vector<128xf32>
    %72 = vector.shape_cast %71 : vector<128xf32> to vector<1x128xf32>
    %73 = arith.mulf %70, %70 : vector<32x128xf32>
    %cst_44 = arith.constant dense<0.000000e+00> : vector<128xf32>
    %74 = vector.multi_reduction <add>, %73, %cst_44 [0] : vector<32x128xf32> to vector<128xf32>
    %75 = vector.shape_cast %74 : vector<128xf32> to vector<1x128xf32>
    %c0_45 = arith.constant 0 : index
    %c0_46 = arith.constant 0 : index
    %76 = vector.load %arg5[%c0_45, %c0_46] : memref<128x8xf32, #tpu.memory_space<vmem>>, vector<128x8xf32>
    %cst_47 = arith.constant dense<0.000000e+00> : vector<1x8xf32>
    %77 = tpu.matmul %72, %76, %cst_47 {dimension_numbers = #tpu.dot_dimension_numbers<[1], [0], [0], [1], [0, 0, 1, 1], [], []>} : vector<1x128xf32>, vector<128x8xf32>, vector<1x8xf32> -> vector<1x8xf32>
    %cst_48 = arith.constant 0.001953125 : f32
    %78 = vector.broadcast %cst_48 : f32 to vector<1x8xf32>
    %79 = arith.mulf %77, %78 : vector<1x8xf32>
    %c0_49 = arith.constant 0 : index
    %c0_50 = arith.constant 0 : index
    %80 = vector.load %arg5[%c0_49, %c0_50] : memref<128x8xf32, #tpu.memory_space<vmem>>, vector<128x8xf32>
    %cst_51 = arith.constant dense<0.000000e+00> : vector<1x8xf32>
    %81 = tpu.matmul %75, %80, %cst_51 {dimension_numbers = #tpu.dot_dimension_numbers<[1], [0], [0], [1], [0, 0, 1, 1], [], []>} : vector<1x128xf32>, vector<128x8xf32>, vector<1x8xf32> -> vector<1x8xf32>
    %cst_52 = arith.constant 0.001953125 : f32
    %82 = vector.broadcast %cst_52 : f32 to vector<1x8xf32>
    %83 = arith.mulf %81, %82 : vector<1x8xf32>
    %84 = arith.mulf %79, %79 : vector<1x8xf32>
    %85 = arith.subf %83, %84 : vector<1x8xf32>
    %cst_53 = arith.constant 9.99999974E-6 : f32
    %86 = vector.broadcast %cst_53 : f32 to vector<1x8xf32>
    %87 = arith.addf %85, %86 : vector<1x8xf32>
    %88 = math.rsqrt %87 : vector<1x8xf32>
    %c0_54 = arith.constant 0 : index
    %c0_55 = arith.constant 0 : index
    %89 = vector.load %arg6[%c0_54, %c0_55] : memref<8x128xf32, #tpu.memory_space<vmem>>, vector<8x128xf32>
    %cst_56 = arith.constant dense<0.000000e+00> : vector<1x128xf32>
    %90 = tpu.matmul %79, %89, %cst_56 {dimension_numbers = #tpu.dot_dimension_numbers<[1], [0], [0], [1], [0, 0, 1, 1], [], []>} : vector<1x8xf32>, vector<8x128xf32>, vector<1x128xf32> -> vector<1x128xf32>
    %c0_57 = arith.constant 0 : index
    %c0_58 = arith.constant 0 : index
    %91 = vector.load %arg6[%c0_57, %c0_58] : memref<8x128xf32, #tpu.memory_space<vmem>>, vector<8x128xf32>
    %cst_59 = arith.constant dense<0.000000e+00> : vector<1x128xf32>
    %92 = tpu.matmul %88, %91, %cst_59 {dimension_numbers = #tpu.dot_dimension_numbers<[1], [0], [0], [1], [0, 0, 1, 1], [], []>} : vector<1x8xf32>, vector<8x128xf32>, vector<1x128xf32> -> vector<1x128xf32>
    %93 = vector.broadcast %90 : vector<1x128xf32> to vector<32x128xf32>
    %94 = arith.subf %70, %93 : vector<32x128xf32>
    %95 = vector.broadcast %92 : vector<1x128xf32> to vector<32x128xf32>
    %96 = arith.mulf %94, %95 : vector<32x128xf32>
    %c0_60 = arith.constant 0 : index
    %c0_61 = arith.constant 0 : index
    %97 = vector.load %arg9[%c0_60, %c0_61] : memref<1x128xf32, #tpu.memory_space<vmem>>, vector<1x128xf32>
    %98 = vector.broadcast %97 : vector<1x128xf32> to vector<32x128xf32>
    %99 = arith.mulf %96, %98 : vector<32x128xf32>
    %c0_62 = arith.constant 0 : index
    %c0_63 = arith.constant 0 : index
    %100 = vector.load %arg10[%c0_62, %c0_63] : memref<1x128xf32, #tpu.memory_space<vmem>>, vector<1x128xf32>
    %101 = vector.broadcast %100 : vector<1x128xf32> to vector<32x128xf32>
    %102 = arith.addf %99, %101 : vector<32x128xf32>
    %103 = arith.addf %102, %24 : vector<32x128xf32>
    %cst_64 = arith.constant 0.000000e+00 : f32
    %104 = vector.broadcast %cst_64 : f32 to vector<32x128xf32>
    %105 = arith.maximumf %103, %104 : vector<32x128xf32>
    %c0_65 = arith.constant 0 : index
    %c0_66 = arith.constant 0 : index
    %106 = vector.load %arg11[%c0_65, %c0_66] : memref<32x128xf32, #tpu.memory_space<vmem>>, vector<32x128xf32>
    tpu.vector_store %arg11[%c0_65, %c0_66], %105 {strides = array<i32>} : memref<32x128xf32, #tpu.memory_space<vmem>>, vector<32x128xf32>,
    return
  }
}

</mosaic_0001>

<llo_original>
// kernel: tpu_custom_call.1
$region0: #{tpu_custom_call.1}
  #allocation0 [shape = 'u32[]', space=smem, size = 0x4, offset = 0x4, fixed_abs, tag = 'smem constant byte address 0x4 - core index']
  #allocation1 [shape = 'u32[144,128]{1,0:T(1,128)}', space=vmem, size = 0x12000, scoped, tag = 'internal scratch']
  %s0 = inlined_call_operand.vmem [shape: f32[2,18,72], index: 0, kind: input, shape index: {}]
  %s1 = inlined_call_operand.vmem [shape: bf16[3,72,256], index: 1, kind: input, shape index: {}]
  %s2 = inlined_call_operand.hbm [shape: bf16[128,384], index: 2, kind: input, shape index: {}]
  %s3 = inlined_call_operand.hbm [shape: f32[32,32], index: 3, kind: input, shape index: {}]
  %s4 = inlined_call_operand.hbm [shape: f32[32,32], index: 4, kind: input, shape index: {}]
  %s5 = inlined_call_operand.vmem [shape: f32[128,8], index: 5, kind: input, shape index: {}]
  %s6 = inlined_call_operand.hbm [shape: f32[8,128], index: 6, kind: input, shape index: {}]
  %s7 = inlined_call_operand.vmem [shape: f32[1,128], index: 7, kind: input, shape index: {}]
  %s8 = inlined_call_operand.vmem [shape: f32[1,128], index: 8, kind: input, shape index: {}]
  %s9 = inlined_call_operand.vmem [shape: f32[1,128], index: 9, kind: input, shape index: {}]
  %s10 = inlined_call_operand.vmem [shape: f32[1,128], index: 10, kind: input, shape index: {}]
  %s11 = inlined_call_operand.hbm [shape: f32[32,128], index: 11, kind: output, shape index: {}]
  %s12 = sld [smem:[#allocation0]]
  $region70: #{tpu_custom_call.1} parent=0
    _
  %s14 = ssub.s32 1, %s12
  %s15 = scalar_select 0, %s14, %s12
  $region1: #{tpu_custom_call.1} parent=0
    #allocation2 [shape = 'u8[98304]{0}', space=vmem, size = 0x18000, scoped, tag = 'input window, operand 2, single buffered']
    #allocation3 [shape = 's32[1]{0}', space=sflag, size = 0x4, scoped, tag = 'scoped memory for tpu_custom_call.1']
    #allocation4 [shape = 's32[1]{0}', space=sflag, size = 0x4, scoped, tag = 'scoped memory for tpu_custom_call.1']
    #allocation5 [shape = 'u8[16384]{0}', space=vmem, size = 0x4000, scoped, tag = 'input window, operand 3, single buffered']
    #allocation6 [shape = 's32[1]{0}', space=sflag, size = 0x4, scoped, tag = 'scoped memory for tpu_custom_call.1']
    #allocation7 [shape = 'u8[16384]{0}', space=vmem, size = 0x4000, scoped, tag = 'input window, operand 4, single buffered']
    #allocation8 [shape = 'u8[4096]{0}', space=vmem, size = 0x1000, scoped, tag = 'input window, operand 6, single buffered']
    #allocation9 [shape = 's32[1]{0}', space=sflag, size = 0x4, scoped, tag = 'scoped memory for tpu_custom_call.1']
    #allocation10 [shape = 'u8[16384]{0}', space=vmem, size = 0x4000, scoped, tag = 'output window, operand 0, single buffered']
    %16 = vsyncpa [#allocation3], 0
    %17 = vsyncpa [#allocation6], 0
    %18 = vsyncpa [#allocation9], 0
    %19 = vsyncpa [#allocation4], 0
    // Predicated region
    $region2: #{tpu_custom_call.1} parent=1 // pred_check
      _
    $region3: #{tpu_custom_call.1} parent=1 // pred_check_branch
      %21 = sbr.rel (0) target = $region5
    $region4: #{tpu_custom_call.1} parent=1 // pred_region
      _
    $region5: #{tpu_custom_call.1} parent=1 // pred_fallthru
      _
    // Predicated region
    $region6: #{tpu_custom_call.1} parent=1 // pred_check
      _
    $region7: #{tpu_custom_call.1} parent=1 // pred_check_branch
      %23 = sbr.rel (0) target = $region9
    $region8: #{tpu_custom_call.1} parent=1 // pred_region
      _
    $region9: #{tpu_custom_call.1} parent=1 // pred_fallthru
      _
    // Predicated region
    $region10: #{tpu_custom_call.1} parent=1 // pred_check
      _
    $region11: #{tpu_custom_call.1} parent=1 // pred_check_branch
      %25 = sbr.rel (0) target = $region13
    $region12: #{tpu_custom_call.1} parent=1 // pred_region
      %s27 = ssub.s32 3072, 3072
      %28 = vsyncadd [#allocation3], %s27
      %s29 = sshll.u32 [#allocation2], 4
      %s30 = int_to_ptr.vmem [resolvable:$true] %s29
      %35 = dma.hbm_to_vmem [thread:$0]  %s2, 3072, %s30, [#allocation3], 192, 192, 12
    $region13: #{tpu_custom_call.1} parent=1 // pred_fallthru
      _
    // Predicated region
    $region14: #{tpu_custom_call.1} parent=1 // pred_check
      _
    $region15: #{tpu_custom_call.1} parent=1 // pred_check_branch
      %37 = sbr.rel (0) target = $region17
    $region16: #{tpu_custom_call.1} parent=1 // pred_region
      %s39 = ssub.s32 512, 512
      %40 = vsyncadd [#allocation6], %s39
      %s41 = sshll.u32 [#allocation5], 4
      %s42 = int_to_ptr.vmem [resolvable:$true] %s41
      %47 = dma.hbm_to_vmem [thread:$0]  %s3, 512, %s42, [#allocation6], 128, 128, 8
    $region17: #{tpu_custom_call.1} parent=1 // pred_fallthru
      _
    // Predicated region
    $region18: #{tpu_custom_call.1} parent=1 // pred_check
      _
    $region19: #{tpu_custom_call.1} parent=1 // pred_check_branch
      %49 = sbr.rel (0) target = $region21
    $region20: #{tpu_custom_call.1} parent=1 // pred_region
      %s51 = ssub.s32 512, 512
      %52 = vsyncadd [#allocation6], %s51
      %s53 = sshll.u32 [#allocation7], 4
      %s54 = int_to_ptr.vmem [resolvable:$true] %s53
      %59 = dma.hbm_to_vmem [thread:$0]  %s4, 512, %s54, [#allocation6], 128, 128, 8
    $region21: #{tpu_custom_call.1} parent=1 // pred_fallthru
      _
    // Predicated region
    $region22: #{tpu_custom_call.1} parent=1 // pred_check
      _
    $region23: #{tpu_custom_call.1} parent=1 // pred_check_branch
      %61 = sbr.rel (0) target = $region25
    $region24: #{tpu_custom_call.1} parent=1 // pred_region
      _
    $region25: #{tpu_custom_call.1} parent=1 // pred_fallthru
      _
    // Predicated region
    $region26: #{tpu_custom_call.1} parent=1 // pred_check
      _
    $region27: #{tpu_custom_call.1} parent=1 // pred_check_branch
      %63 = sbr.rel (0) target = $region29
    $region28: #{tpu_custom_call.1} parent=1 // pred_region
      %s65 = ssub.s32 128, 128
      %66 = vsyncadd [#allocation9], %s65
      %s68 = sshll.u32 [#allocation8], 4
      %s69 = int_to_ptr.vmem [resolvable:$true] %s68
      %71 = dma.hbm_to_vmem [thread:$0]  %s6, 128, %s69, [#allocation9]
    $region29: #{tpu_custom_call.1} parent=1 // pred_fallthru
      _
    // Predicated region
    $region30: #{tpu_custom_call.1} parent=1 // pred_check
      _
    $region31: #{tpu_custom_call.1} parent=1 // pred_check_branch
      %73 = sbr.rel (0) target = $region33
    $region32: #{tpu_custom_call.1} parent=1 // pred_region
      _
    $region33: #{tpu_custom_call.1} parent=1 // pred_fallthru
      _
    // Predicated region
    $region34: #{tpu_custom_call.1} parent=1 // pred_check
      _
    $region35: #{tpu_custom_call.1} parent=1 // pred_check_branch
      %75 = sbr.rel (0) target = $region37
    $region36: #{tpu_custom_call.1} parent=1 // pred_region
      _
    $region37: #{tpu_custom_call.1} parent=1 // pred_fallthru
      _
    // Predicated region
    $region38: #{tpu_custom_call.1} parent=1 // pred_check
      _
    $region39: #{tpu_custom_call.1} parent=1 // pred_check_branch
      %77 = sbr.rel (0) target = $region41
    $region40: #{tpu_custom_call.1} parent=1 // pred_region
      _
    $region41: #{tpu_custom_call.1} parent=1 // pred_fallthru
      _
    // Predicated region
    $region42: #{tpu_custom_call.1} parent=1 // pred_check
      _
    $region43: #{tpu_custom_call.1} parent=1 // pred_check_branch
      %79 = sbr.rel (0) target = $region45
    $region44: #{tpu_custom_call.1} parent=1 // pred_region
      _
    $region45: #{tpu_custom_call.1} parent=1 // pred_fallthru
      _
    // Predicated region
    $region46: #{tpu_custom_call.1} parent=1 // pred_check
      _
    $region47: #{tpu_custom_call.1} parent=1 // pred_check_branch
      %81 = sbr.rel (0) target = $region49
    $region48: #{tpu_custom_call.1} parent=1 // pred_region
      %82 = dma.done [#allocation3], 3072
    $region49: #{tpu_custom_call.1} parent=1 // pred_fallthru
      _
    // Predicated region
    $region50: #{tpu_custom_call.1} parent=1 // pred_check
      _
    $region51: #{tpu_custom_call.1} parent=1 // pred_check_branch
      %84 = sbr.rel (0) target = $region53
    $region52: #{tpu_custom_call.1} parent=1 // pred_region
      %85 = dma.done [#allocation6], 512
    $region53: #{tpu_custom_call.1} parent=1 // pred_fallthru
      _
    // Predicated region
    $region54: #{tpu_custom_call.1} parent=1 // pred_check
      _
    $region55: #{tpu_custom_call.1} parent=1 // pred_check_branch
      %87 = sbr.rel (0) target = $region57
    $region56: #{tpu_custom_call.1} parent=1 // pred_region
      %88 = dma.done [#allocation6], 512
    $region57: #{tpu_custom_call.1} parent=1 // pred_fallthru
      _
    // Predicated region
    $region58: #{tpu_custom_call.1} parent=1 // pred_check
      _
    $region59: #{tpu_custom_call.1} parent=1 // pred_check_branch
      %90 = sbr.rel (0) target = $region61
    $region60: #{tpu_custom_call.1} parent=1 // pred_region
      %91 = dma.done [#allocation9], 128
    $region61: #{tpu_custom_call.1} parent=1 // pred_fallthru
      _
    %v93 = vld [vmem:[%s0] sm:$0xff]
    %v94 = vld [vmem:[%s0 + $0x8] sm:$0xff]
    %v95 = vld [vmem:[%s0 + $0x10] sm:$0x3]
    %v96 = vld [vmem:[%s0 + $0x18] sm:$0xff]
    %v97 = vld [vmem:[%s0 + $0x20] sm:$0xff]
    %v98 = vld [vmem:[%s0 + $0x28] sm:$0x3]
    %v99 = vpack.c.bf16 %v94, %v93
    %v100 = vpack.c.bf16 %v97, %v96
    %v101 = vld [vmem:[%s1] sm:$0xff]
    %v102 = vld [vmem:[%s1 + $0x8] sm:$0xff]
    %v103 = vld [vmem:[%s1 + $0x10] sm:$0xff]
    %v104 = vld [vmem:[%s1 + $0x18] sm:$0xff]
    %v105 = vld [vmem:[%s1 + $0x20] sm:$0xff]
    %v106 = vld [vmem:[%s1 + $0x28] sm:$0xff]
    %v107 = vld [vmem:[%s1 + $0x30] sm:$0xff]
    %v108 = vld [vmem:[%s1 + $0x38] sm:$0xff]
    %v109 = vld [vmem:[%s1 + $0x40] sm:$0xff]
    %vm116 = vcmask 1046528
    %v117 = vrot.slane %v93, 1
    %v118 = vrot.slane %v94, 1
    %v119 = vsel %vm116, %v117, %v118
    %v120 = vrot.slane %v95, 1
    %v121 = vsel %vm116, %v118, %v120
    %v122 = vrot.slane %v96, 1
    %v123 = vrot.slane %v97, 1
    %v124 = vsel %vm116, %v122, %v123
    %v125 = vrot.slane %v98, 1
    %v126 = vsel %vm116, %v123, %v125
    %v131 = vpack.c.bf16 %v121, %v119
    %v132 = vpack.c.bf16 %v126, %v124
    %s133 = scalar_lea.vmem %s1, 72
    %v134 = vld [vmem:[%s133] sm:$0xff]
    %v135 = vld [vmem:[%s133 + $0x8] sm:$0xff]
    %v136 = vld [vmem:[%s133 + $0x10] sm:$0xff]
    %v137 = vld [vmem:[%s133 + $0x18] sm:$0xff]
    %v138 = vld [vmem:[%s133 + $0x20] sm:$0xff]
    %v139 = vld [vmem:[%s133 + $0x28] sm:$0xff]
    %v140 = vld [vmem:[%s133 + $0x30] sm:$0xff]
    %v141 = vld [vmem:[%s133 + $0x38] sm:$0xff]
    %v142 = vld [vmem:[%s133 + $0x40] sm:$0xff]
    %v152 = vunpack.c.l.b16 %v134
    %v153 = vunpack.c.h.b16 %v134
    %v154 = vunpack.c.l.b16 %v135
    %v155 = vunpack.c.h.b16 %v135
    %v156 = vunpack.c.l.b16 %v136
    %v157 = vunpack.c.h.b16 %v136
    %v158 = vunpack.c.l.b16 %v137
    %v159 = vunpack.c.h.b16 %v137
    %v160 = vunpack.c.l.b16 %v138
    %v161 = vunpack.c.h.b16 %v138
    %v162 = vunpack.c.l.b16 %v139
    %v163 = vunpack.c.h.b16 %v139
    %v164 = vunpack.c.l.b16 %v140
    %v165 = vunpack.c.h.b16 %v140
    %v166 = vunpack.c.l.b16 %v141
    %v167 = vunpack.c.h.b16 %v141
    %v168 = vunpack.c.l.b16 %v142
    %v169 = vunpack.c.h.b16 %v142
    %v170 = vpack.c.b16 %v154, %v152
    %v171 = vpack.c.b16 %v155, %v153
    %v172 = vpack.c.b16 %v158, %v156
    %v173 = vpack.c.b16 %v159, %v157
    %v174 = vpack.c.b16 %v162, %v160
    %v175 = vpack.c.b16 %v163, %v161
    %v176 = vpack.c.b16 %v166, %v164
    %v177 = vpack.c.b16 %v167, %v165
    %v178 = vpack.c.b16 %v168, %v168
    %v179 = vpack.c.b16 %v169, %v169
    %vm188 = vcmask 588800
    %v190 = vsel %vm188, %v131, 0
    %v193 = vsel %vm188, %v132, 0
    %vm195 = vcmask 1043456
    %v197 = vsel %vm195, %v178, 0
    %v200 = vsel %vm195, %v179, 0
    %202 = vmatprep.subr.bf16.mxu0 0
    %203 = vmatpush1.bf16.msra.mxu0 0
    %204 = vmatprep.subr.bf16.mxu0 0
    %205 = vmatpush1.bf16.msra.mxu0 0
    %206 = vmatprep.subr.bf16.mxu0 0
    %207 = vmatpush1.bf16.msra.mxu0 0
    %208 = vmatprep.subr.bf16.mxu0 %v200
    %209 = vmatpush1.bf16.msra.mxu0 %v197
    %210 = vmatprep.subr.bf16.mxu0 %v177
    %211 = vmatpush1.bf16.msra.mxu0 %v176
    %212 = vmatprep.subr.bf16.mxu0 %v175
    %213 = vmatpush1.bf16.msra.mxu0 %v174
    %214 = vmatprep.subr.bf16.mxu0 %v173
    %215 = vmatpush1.bf16.msra.mxu0 %v172
    %216 = vmatprep.subr.bf16.mxu0 %v171
    %217 = vmatpush1.bf16.msra.mxu0 %v170
    %218 = vmatprep.subr.bf16.mxu0 0
    %219 = vmatpush2.bf16.msra.mxu0 0
    %220 = vmatprep.subr.bf16.mxu0 0
    %221 = vmatpush2.bf16.msra.mxu0 0
    %222 = vmatprep.subr.bf16.mxu0 0
    %223 = vmatpush2.bf16.msra.mxu0 0
    %224 = vmatprep.subr.bf16.mxu0 0
    %225 = vmatpush2.bf16.msra.mxu0 0
    %226 = vmatprep.subr.bf16.mxu0 0
    %227 = vmatpush2.bf16.msra.mxu0 0
    %228 = vmatprep.subr.bf16.mxu0 0
    %229 = vmatpush2.bf16.msra.mxu0 0
    %230 = vmatprep.subr.bf16.mxu0 0
    %231 = vmatpush2.bf16.msra.mxu0 0
    %232 = vmatprep.subr.bf16.mxu0 0
    %233 = vmatpush2.bf16.msra.mxu0 0
    %234 = vmatprep.mubr.bf16.mxu0 0
    %235 = vmatmul.mubr.bf16.gmra.mxu0 %v190
    %v236 = vpop.f32.mrf.mxu0
    %v237 = vadd.f32 0.0, %v236
    %v238 = vpop.f32.mrf.mxu0
    %v239 = vadd.f32 0.0, %v238
    %v240 = vpop.f32.mrf.mxu0
    %v241 = vadd.f32 0.0, %v240
    %v242 = vpop.f32.mrf.mxu0
    %v243 = vadd.f32 0.0, %v242
    %244 = vmatprep.mubr.bf16.mxu0 0
    %245 = vmatmul.mubr.bf16.gmra.mxu0 %v193
    %v246 = vpop.f32.mrf.mxu0
    %v247 = vadd.f32 0.0, %v246
    %v248 = vpop.f32.mrf.mxu0
    %v249 = vadd.f32 0.0, %v248
    %v250 = vpop.f32.mrf.mxu0
    %v251 = vadd.f32 0.0, %v250
    %v252 = vpop.f32.mrf.mxu0
    %v253 = vadd.f32 0.0, %v252
    %254 = vdwg.mxu0
    %v264 = vunpack.c.l.b16 %v101
    %v265 = vunpack.c.h.b16 %v101
    %v266 = vunpack.c.l.b16 %v102
    %v267 = vunpack.c.h.b16 %v102
    %v268 = vunpack.c.l.b16 %v103
    %v269 = vunpack.c.h.b16 %v103
    %v270 = vunpack.c.l.b16 %v104
    %v271 = vunpack.c.h.b16 %v104
    %v272 = vunpack.c.l.b16 %v105
    %v273 = vunpack.c.h.b16 %v105
    %v274 = vunpack.c.l.b16 %v106
    %v275 = vunpack.c.h.b16 %v106
    %v276 = vunpack.c.l.b16 %v107
    %v277 = vunpack.c.h.b16 %v107
    %v278 = vunpack.c.l.b16 %v108
    %v279 = vunpack.c.h.b16 %v108
    %v280 = vunpack.c.l.b16 %v109
    %v281 = vunpack.c.h.b16 %v109
    %v282 = vpack.c.b16 %v266, %v264
    %v283 = vpack.c.b16 %v267, %v265
    %v284 = vpack.c.b16 %v270, %v268
    %v285 = vpack.c.b16 %v271, %v269
    %v286 = vpack.c.b16 %v274, %v272
    %v287 = vpack.c.b16 %v275, %v273
    %v288 = vpack.c.b16 %v278, %v276
    %v289 = vpack.c.b16 %v279, %v277
    %v290 = vpack.c.b16 %v280, %v280
    %v291 = vpack.c.b16 %v281, %v281
    %v301 = vsel %vm188, %v99, 0
    %v304 = vsel %vm188, %v100, 0
    %v307 = vsel %vm195, %v290, 0
    %v310 = vsel %vm195, %v291, 0
    %312 = vmatprep.subr.bf16.mxu0 0
    %313 = vmatpush1.bf16.msra.mxu0 0
    %314 = vmatprep.subr.bf16.mxu0 0
    %315 = vmatpush1.bf16.msra.mxu0 0
    %316 = vmatprep.subr.bf16.mxu0 0
    %317 = vmatpush1.bf16.msra.mxu0 0
    %318 = vmatprep.subr.bf16.mxu0 %v310
    %319 = vmatpush1.bf16.msra.mxu0 %v307
    %320 = vmatprep.subr.bf16.mxu0 %v289
    %321 = vmatpush1.bf16.msra.mxu0 %v288
    %322 = vmatprep.subr.bf16.mxu0 %v287
    %323 = vmatpush1.bf16.msra.mxu0 %v286
    %324 = vmatprep.subr.bf16.mxu0 %v285
    %325 = vmatpush1.bf16.msra.mxu0 %v284
    %326 = vmatprep.subr.bf16.mxu0 %v283
    %327 = vmatpush1.bf16.msra.mxu0 %v282
    %328 = vmatprep.subr.bf16.mxu0 0
    %329 = vmatpush2.bf16.msra.mxu0 0
    %330 = vmatprep.subr.bf16.mxu0 0
    %331 = vmatpush2.bf16.msra.mxu0 0
    %332 = vmatprep.subr.bf16.mxu0 0
    %333 = vmatpush2.bf16.msra.mxu0 0
    %334 = vmatprep.subr.bf16.mxu0 0
    %335 = vmatpush2.bf16.msra.mxu0 0
    %336 = vmatprep.subr.bf16.mxu0 0
    %337 = vmatpush2.bf16.msra.mxu0 0
    %338 = vmatprep.subr.bf16.mxu0 0
    %339 = vmatpush2.bf16.msra.mxu0 0
    %340 = vmatprep.subr.bf16.mxu0 0
    %341 = vmatpush2.bf16.msra.mxu0 0
    %342 = vmatprep.subr.bf16.mxu0 0
    %343 = vmatpush2.bf16.msra.mxu0 0
    %344 = vmatprep.mubr.bf16.mxu0 0
    %345 = vmatmul.mubr.bf16.gmra.mxu0 %v301
    %v346 = vpop.f32.mrf.mxu0
    %v347 = vadd.f32 %v237, %v346
    %v348 = vpop.f32.mrf.mxu0
    %v349 = vadd.f32 %v239, %v348
    %v350 = vpop.f32.mrf.mxu0
    %v351 = vadd.f32 %v241, %v350
    %v352 = vpop.f32.mrf.mxu0
    %v353 = vadd.f32 %v243, %v352
    %354 = vmatprep.mubr.bf16.mxu0 0
    %355 = vmatmul.mubr.bf16.gmra.mxu0 %v304
    %v356 = vpop.f32.mrf.mxu0
    %v357 = vadd.f32 %v247, %v356
    %v358 = vpop.f32.mrf.mxu0
    %v359 = vadd.f32 %v249, %v358
    %v360 = vpop.f32.mrf.mxu0
    %v361 = vadd.f32 %v251, %v360
    %v362 = vpop.f32.mrf.mxu0
    %v363 = vadd.f32 %v253, %v362
    %364 = vdwg.mxu0
    %vm365 = vcmask 1045504
    %v366 = vrot.slane %v93, 2
    %v367 = vrot.slane %v94, 2
    %v368 = vsel %vm365, %v366, %v367
    %v369 = vrot.slane %v95, 2
    %v370 = vsel %vm365, %v367, %v369
    %v371 = vrot.slane %v96, 2
    %v372 = vrot.slane %v97, 2
    %v373 = vsel %vm365, %v371, %v372
    %v374 = vrot.slane %v98, 2
    %v375 = vsel %vm365, %v372, %v374
    %v380 = vpack.c.bf16 %v370, %v368
    %v381 = vpack.c.bf16 %v375, %v373
    %s382 = scalar_lea.vmem %s1, 144
    %v383 = vld [vmem:[%s382] sm:$0xff]
    %v384 = vld [vmem:[%s382 + $0x8] sm:$0xff]
    %v385 = vld [vmem:[%s382 + $0x10] sm:$0xff]
    %v386 = vld [vmem:[%s382 + $0x18] sm:$0xff]
    %v387 = vld [vmem:[%s382 + $0x20] sm:$0xff]
    %v388 = vld [vmem:[%s382 + $0x28] sm:$0xff]
    %v389 = vld [vmem:[%s382 + $0x30] sm:$0xff]
    %v390 = vld [vmem:[%s382 + $0x38] sm:$0xff]
    %v391 = vld [vmem:[%s382 + $0x40] sm:$0xff]
    %v401 = vunpack.c.l.b16 %v383
    %v402 = vunpack.c.h.b16 %v383
    %v403 = vunpack.c.l.b16 %v384
    %v404 = vunpack.c.h.b16 %v384
    %v405 = vunpack.c.l.b16 %v385
    %v406 = vunpack.c.h.b16 %v385
    %v407 = vunpack.c.l.b16 %v386
    %v408 = vunpack.c.h.b16 %v386
    %v409 = vunpack.c.l.b16 %v387
    %v410 = vunpack.c.h.b16 %v387
    %v411 = vunpack.c.l.b16 %v388
    %v412 = vunpack.c.h.b16 %v388
    %v413 = vunpack.c.l.b16 %v389
    %v414 = vunpack.c.h.b16 %v389
    %v415 = vunpack.c.l.b16 %v390
    %v416 = vunpack.c.h.b16 %v390
    %v417 = vunpack.c.l.b16 %v391
    %v418 = vunpack.c.h.b16 %v391
    %v419 = vpack.c.b16 %v403, %v401
    %v420 = vpack.c.b16 %v404, %v402
    %v421 = vpack.c.b16 %v407, %v405
    %v422 = vpack.c.b16 %v408, %v406
    %v423 = vpack.c.b16 %v411, %v409
    %v424 = vpack.c.b16 %v412, %v410
    %v425 = vpack.c.b16 %v415, %v413
    %v426 = vpack.c.b16 %v416, %v414
    %v427 = vpack.c.b16 %v417, %v417
    %v428 = vpack.c.b16 %v418, %v418
    %v438 = vsel %vm188, %v380, 0
    %v441 = vsel %vm188, %v381, 0
    %v444 = vsel %vm195, %v427, 0
    %v447 = vsel %vm195, %v428, 0
    %449 = vmatprep.subr.bf16.mxu0 0
    %450 = vmatpush1.bf16.msra.mxu0 0
    %451 = vmatprep.subr.bf16.mxu0 0
    %452 = vmatpush1.bf16.msra.mxu0 0
    %453 = vmatprep.subr.bf16.mxu0 0
    %454 = vmatpush1.bf16.msra.mxu0 0
    %455 = vmatprep.subr.bf16.mxu0 %v447
    %456 = vmatpush1.bf16.msra.mxu0 %v444
    %457 = vmatprep.subr.bf16.mxu0 %v426
    %458 = vmatpush1.bf16.msra.mxu0 %v425
    %459 = vmatprep.subr.bf16.mxu0 %v424
    %460 = vmatpush1.bf16.msra.mxu0 %v423
    %461 = vmatprep.subr.bf16.mxu0 %v422
    %462 = vmatpush1.bf16.msra.mxu0 %v421
    %463 = vmatprep.subr.bf16.mxu0 %v420
    %464 = vmatpush1.bf16.msra.mxu0 %v419
    %465 = vmatprep.subr.bf16.mxu0 0
    %466 = vmatpush2.bf16.msra.mxu0 0
    %467 = vmatprep.subr.bf16.mxu0 0
    %468 = vmatpush2.bf16.msra.mxu0 0
    %469 = vmatprep.subr.bf16.mxu0 0
    %470 = vmatpush2.bf16.msra.mxu0 0
    %471 = vmatprep.subr.bf16.mxu0 0
    %472 = vmatpush2.bf16.msra.mxu0 0
    %473 = vmatprep.subr.bf16.mxu0 0
    %474 = vmatpush2.bf16.msra.mxu0 0
    %475 = vmatprep.subr.bf16.mxu0 0
    %476 = vmatpush2.bf16.msra.mxu0 0
    %477 = vmatprep.subr.bf16.mxu0 0
    %478 = vmatpush2.bf16.msra.mxu0 0
    %479 = vmatprep.subr.bf16.mxu0 0
    %480 = vmatpush2.bf16.msra.mxu0 0
    %481 = vmatprep.mubr.bf16.mxu0 0
    %482 = vmatmul.mubr.bf16.gmra.mxu0 %v438
    %v483 = vpop.f32.mrf.mxu0
    %v484 = vadd.f32 0.0, %v483
    %v485 = vpop.f32.mrf.mxu0
    %v486 = vadd.f32 0.0, %v485
    %v487 = vpop.f32.mrf.mxu0
    %v488 = vadd.f32 0.0, %v487
    %v489 = vpop.f32.mrf.mxu0
    %v490 = vadd.f32 0.0, %v489
    %491 = vmatprep.mubr.bf16.mxu0 0
    %492 = vmatmul.mubr.bf16.gmra.mxu0 %v441
    %v493 = vpop.f32.mrf.mxu0
    %v494 = vadd.f32 0.0, %v493
    %v495 = vpop.f32.mrf.mxu0
    %v496 = vadd.f32 0.0, %v495
    %v497 = vpop.f32.mrf.mxu0
    %v498 = vadd.f32 0.0, %v497
    %v499 = vpop.f32.mrf.mxu0
    %v500 = vadd.f32 0.0, %v499
    %501 = vdwg.mxu0
    %v502 = vadd.f32 %v347, %v484
    %v503 = vadd.f32 %v349, %v486
    %v504 = vadd.f32 %v351, %v488
    %v505 = vadd.f32 %v353, %v490
    %v506 = vadd.f32 %v357, %v494
    %v507 = vadd.f32 %v359, %v496
    %v508 = vadd.f32 %v361, %v498
    %v509 = vadd.f32 %v363, %v500
    %v510 = vadd.f32 %v502, %v504
    %v511 = vadd.f32 %v510, %v506
    %v512 = vadd.f32 %v511, %v508
    %v513 = vrot.slane %v512, 4
    %v514 = vadd.f32 %v512, %v513
    %v515 = vrot.slane %v514, 2
    %v516 = vadd.f32 %v514, %v515
    %v517 = vrot.slane %v516, 1
    %v518 = vadd.f32 %v516, %v517
    %v519 = vmul.f32 %v502, %v502
    %v520 = vmul.f32 %v504, %v504
    %v521 = vmul.f32 %v506, %v506
    %v522 = vmul.f32 %v508, %v508
    %v523 = vadd.f32 %v519, %v520
    %v524 = vadd.f32 %v523, %v521
    %v525 = vadd.f32 %v524, %v522
    %v526 = vrot.slane %v525, 4
    %v527 = vadd.f32 %v525, %v526
    %v528 = vrot.slane %v527, 2
    %v529 = vadd.f32 %v527, %v528
    %v530 = vrot.slane %v529, 1
    %v531 = vadd.f32 %v529, %v530
    %v532 = vld [vmem:[%s5] sm:$0xff]
    %v533 = vld [vmem:[%s5 + $0x8] sm:$0xff]
    %v534 = vld [vmem:[%s5 + $0x10] sm:$0xff]
    %v535 = vld [vmem:[%s5 + $0x18] sm:$0xff]
    %v536 = vld [vmem:[%s5 + $0x20] sm:$0xff]
    %v537 = vld [vmem:[%s5 + $0x28] sm:$0xff]
    %v538 = vld [vmem:[%s5 + $0x30] sm:$0xff]
    %v539 = vld [vmem:[%s5 + $0x38] sm:$0xff]
    %v540 = vld [vmem:[%s5 + $0x40] sm:$0xff]
    %v541 = vld [vmem:[%s5 + $0x48] sm:$0xff]
    %v542 = vld [vmem:[%s5 + $0x50] sm:$0xff]
    %v543 = vld [vmem:[%s5 + $0x58] sm:$0xff]
    %v544 = vld [vmem:[%s5 + $0x60] sm:$0xff]
    %v545 = vld [vmem:[%s5 + $0x68] sm:$0xff]
    %v546 = vld [vmem:[%s5 + $0x70] sm:$0xff]
    %v547 = vld [vmem:[%s5 + $0x78] sm:$0xff]
    %548 = vmatprep.subr.mxu0 0.0
    %549 = vmatpush1.msra.mxu0 %v547
    %550 = vmatprep.subr.mxu0 0.0
    %551 = vmatpush1.msra.mxu0 %v546
    %552 = vmatprep.subr.mxu0 0.0
    %553 = vmatpush1.msra.mxu0 %v545
    %554 = vmatprep.subr.mxu0 0.0
    %555 = vmatpush1.msra.mxu0 %v544
    %556 = vmatprep.subr.mxu0 0.0
    %557 = vmatpush1.msra.mxu0 %v543
    %558 = vmatprep.subr.mxu0 0.0
    %559 = vmatpush1.msra.mxu0 %v542
    %560 = vmatprep.subr.mxu0 0.0
    %561 = vmatpush1.msra.mxu0 %v541
    %562 = vmatprep.subr.mxu0 0.0
    %563 = vmatpush1.msra.mxu0 %v540
    %564 = vmatprep.subr.mxu0 0.0
    %565 = vmatpush1.msra.mxu0 %v539
    %566 = vmatprep.subr.mxu0 0.0
    %567 = vmatpush1.msra.mxu0 %v538
    %568 = vmatprep.subr.mxu0 0.0
    %569 = vmatpush1.msra.mxu0 %v537
    %570 = vmatprep.subr.mxu0 0.0
    %571 = vmatpush1.msra.mxu0 %v536
    %572 = vmatprep.subr.mxu0 0.0
    %573 = vmatpush1.msra.mxu0 %v535
    %574 = vmatprep.subr.mxu0 0.0
    %575 = vmatpush1.msra.mxu0 %v534
    %576 = vmatprep.subr.mxu0 0.0
    %577 = vmatpush1.msra.mxu0 %v533
    %578 = vmatprep.subr.mxu0 0.0
    %579 = vmatpush1.msra.mxu0 %v532
    %580 = vmatprep.subr.mxu0 0.0
    %581 = vmatpush2.msra.mxu0 0.0
    %582 = vmatprep.subr.mxu0 0.0
    %583 = vmatpush2.msra.mxu0 0.0
    %584 = vmatprep.subr.mxu0 0.0
    %585 = vmatpush2.msra.mxu0 0.0
    %586 = vmatprep.subr.mxu0 0.0
    %587 = vmatpush2.msra.mxu0 0.0
    %588 = vmatprep.subr.mxu0 0.0
    %589 = vmatpush2.msra.mxu0 0.0
    %590 = vmatprep.subr.mxu0 0.0
    %591 = vmatpush2.msra.mxu0 0.0
    %592 = vmatprep.subr.mxu0 0.0
    %593 = vmatpush2.msra.mxu0 0.0
    %594 = vmatprep.subr.mxu0 0.0
    %595 = vmatpush2.msra.mxu0 0.0
    %596 = vmatprep.subr.mxu0 0.0
    %597 = vmatpush2.msra.mxu0 0.0
    %598 = vmatprep.subr.mxu0 0.0
    %599 = vmatpush2.msra.mxu0 0.0
    %600 = vmatprep.subr.mxu0 0.0
    %601 = vmatpush2.msra.mxu0 0.0
    %602 = vmatprep.subr.mxu0 0.0
    %603 = vmatpush2.msra.mxu0 0.0
    %604 = vmatprep.subr.mxu0 0.0
    %605 = vmatpush2.msra.mxu0 0.0
    %606 = vmatprep.subr.mxu0 0.0
    %607 = vmatpush2.msra.mxu0 0.0
    %608 = vmatprep.subr.mxu0 0.0
    %609 = vmatpush2.msra.mxu0 0.0
    %610 = vmatprep.subr.mxu0 0.0
    %611 = vmatpush2.msra.mxu0 0.0
    %612 = vmatprep.mubr.f32.mxu0 0.0
    %613 = vmatmul.mubr.f32.gmra.mxu0 %v518
    %v614 = vpop.f32.mrf.mxu0
    %v615 = vadd.f32 0.0, %v614
    %v616 = vpop.f32.mrf.mxu0
    %617 = vdwg.mxu0
    %v618 = vmul.f32 %v615, 0.001953125
    %619 = vmatprep.subr.mxu0 0.0
    %620 = vmatpush1.msra.mxu0 %v547
    %621 = vmatprep.subr.mxu0 0.0
    %622 = vmatpush1.msra.mxu0 %v546
    %623 = vmatprep.subr.mxu0 0.0
    %624 = vmatpush1.msra.mxu0 %v545
    %625 = vmatprep.subr.mxu0 0.0
    %626 = vmatpush1.msra.mxu0 %v544
    %627 = vmatprep.subr.mxu0 0.0
    %628 = vmatpush1.msra.mxu0 %v543
    %629 = vmatprep.subr.mxu0 0.0
    %630 = vmatpush1.msra.mxu0 %v542
    %631 = vmatprep.subr.mxu0 0.0
    %632 = vmatpush1.msra.mxu0 %v541
    %633 = vmatprep.subr.mxu0 0.0
    %634 = vmatpush1.msra.mxu0 %v540
    %635 = vmatprep.subr.mxu0 0.0
    %636 = vmatpush1.msra.mxu0 %v539
    %637 = vmatprep.subr.mxu0 0.0
    %638 = vmatpush1.msra.mxu0 %v538
    %639 = vmatprep.subr.mxu0 0.0
    %640 = vmatpush1.msra.mxu0 %v537
    %641 = vmatprep.subr.mxu0 0.0
    %642 = vmatpush1.msra.mxu0 %v536
    %643 = vmatprep.subr.mxu0 0.0
    %644 = vmatpush1.msra.mxu0 %v535
    %645 = vmatprep.subr.mxu0 0.0
    %646 = vmatpush1.msra.mxu0 %v534
    %647 = vmatprep.subr.mxu0 0.0
    %648 = vmatpush1.msra.mxu0 %v533
    %649 = vmatprep.subr.mxu0 0.0
    %650 = vmatpush1.msra.mxu0 %v532
    %651 = vmatprep.subr.mxu0 0.0
    %652 = vmatpush2.msra.mxu0 0.0
    %653 = vmatprep.subr.mxu0 0.0
    %654 = vmatpush2.msra.mxu0 0.0
    %655 = vmatprep.subr.mxu0 0.0
    %656 = vmatpush2.msra.mxu0 0.0
    %657 = vmatprep.subr.mxu0 0.0
    %658 = vmatpush2.msra.mxu0 0.0
    %659 = vmatprep.subr.mxu0 0.0
    %660 = vmatpush2.msra.mxu0 0.0
    %661 = vmatprep.subr.mxu0 0.0
    %662 = vmatpush2.msra.mxu0 0.0
    %663 = vmatprep.subr.mxu0 0.0
    %664 = vmatpush2.msra.mxu0 0.0
    %665 = vmatprep.subr.mxu0 0.0
    %666 = vmatpush2.msra.mxu0 0.0
    %667 = vmatprep.subr.mxu0 0.0
    %668 = vmatpush2.msra.mxu0 0.0
    %669 = vmatprep.subr.mxu0 0.0
    %670 = vmatpush2.msra.mxu0 0.0
    %671 = vmatprep.subr.mxu0 0.0
    %672 = vmatpush2.msra.mxu0 0.0
    %673 = vmatprep.subr.mxu0 0.0
    %674 = vmatpush2.msra.mxu0 0.0
    %675 = vmatprep.subr.mxu0 0.0
    %676 = vmatpush2.msra.mxu0 0.0
    %677 = vmatprep.subr.mxu0 0.0
    %678 = vmatpush2.msra.mxu0 0.0
    %679 = vmatprep.subr.mxu0 0.0
    %680 = vmatpush2.msra.mxu0 0.0
    %681 = vmatprep.subr.mxu0 0.0
    %682 = vmatpush2.msra.mxu0 0.0
    %683 = vmatprep.mubr.f32.mxu0 0.0
    %684 = vmatmul.mubr.f32.gmra.mxu0 %v531
    %v685 = vpop.f32.mrf.mxu0
    %v686 = vadd.f32 0.0, %v685
    %v687 = vpop.f32.mrf.mxu0
    %688 = vdwg.mxu0
    %v689 = vmul.f32 %v686, 0.001953125
    %v690 = vmul.f32 %v618, %v618
    %v691 = vsub.f32 %v689, %v690
    %v692 = vadd.f32 %v691, 1e-05
    %v693 = vrsqrt.pop %v692
    %v694 = vld [vmem:[#allocation8] sm:$0xff]
    %vm695 = vcmask 64512
    %v697 = vsel %vm695, %v618, 0
    %699 = vmatprep.subr.mxu0 0.0
    %700 = vmatpush1.msra.mxu0 0.0
    %701 = vmatprep.subr.mxu0 0.0
    %702 = vmatpush1.msra.mxu0 0.0
    %703 = vmatprep.subr.mxu0 0.0
    %704 = vmatpush1.msra.mxu0 0.0
    %705 = vmatprep.subr.mxu0 0.0
    %706 = vmatpush1.msra.mxu0 0.0
    %707 = vmatprep.subr.mxu0 0.0
    %708 = vmatpush1.msra.mxu0 0.0
    %709 = vmatprep.subr.mxu0 0.0
    %710 = vmatpush1.msra.mxu0 0.0
    %711 = vmatprep.subr.mxu0 0.0
    %712 = vmatpush1.msra.mxu0 0.0
    %713 = vmatprep.subr.mxu0 0.0
    %714 = vmatpush1.msra.mxu0 0.0
    %715 = vmatprep.subr.mxu0 0.0
    %716 = vmatpush1.msra.mxu0 0.0
    %717 = vmatprep.subr.mxu0 0.0
    %718 = vmatpush1.msra.mxu0 0.0
    %719 = vmatprep.subr.mxu0 0.0
    %720 = vmatpush1.msra.mxu0 0.0
    %721 = vmatprep.subr.mxu0 0.0
    %722 = vmatpush1.msra.mxu0 0.0
    %723 = vmatprep.subr.mxu0 0.0
    %724 = vmatpush1.msra.mxu0 0.0
    %725 = vmatprep.subr.mxu0 0.0
    %726 = vmatpush1.msra.mxu0 0.0
    %727 = vmatprep.subr.mxu0 0.0
    %728 = vmatpush1.msra.mxu0 0.0
    %729 = vmatprep.subr.mxu0 0.0
    %730 = vmatpush1.msra.mxu0 %v694
    %731 = vmatprep.subr.mxu0 0.0
    %732 = vmatpush2.msra.mxu0 0.0
    %733 = vmatprep.subr.mxu0 0.0
    %734 = vmatpush2.msra.mxu0 0.0
    %735 = vmatprep.subr.mxu0 0.0
    %736 = vmatpush2.msra.mxu0 0.0
    %737 = vmatprep.subr.mxu0 0.0
    %738 = vmatpush2.msra.mxu0 0.0
    %739 = vmatprep.subr.mxu0 0.0
    %740 = vmatpush2.msra.mxu0 0.0
    %741 = vmatprep.subr.mxu0 0.0
    %742 = vmatpush2.msra.mxu0 0.0
    %743 = vmatprep.subr.mxu0 0.0
    %744 = vmatpush2.msra.mxu0 0.0
    %745 = vmatprep.subr.mxu0 0.0
    %746 = vmatpush2.msra.mxu0 0.0
    %747 = vmatprep.subr.mxu0 0.0
    %748 = vmatpush2.msra.mxu0 0.0
    %749 = vmatprep.subr.mxu0 0.0
    %750 = vmatpush2.msra.mxu0 0.0
    %751 = vmatprep.subr.mxu0 0.0
    %752 = vmatpush2.msra.mxu0 0.0
    %753 = vmatprep.subr.mxu0 0.0
    %754 = vmatpush2.msra.mxu0 0.0
    %755 = vmatprep.subr.mxu0 0.0
    %756 = vmatpush2.msra.mxu0 0.0
    %757 = vmatprep.subr.mxu0 0.0
    %758 = vmatpush2.msra.mxu0 0.0
    %759 = vmatprep.subr.mxu0 0.0
    %760 = vmatpush2.msra.mxu0 0.0
    %761 = vmatprep.subr.mxu0 0.0
    %762 = vmatpush2.msra.mxu0 0.0
    %763 = vmatprep.mubr.f32.mxu0 0.0
    %764 = vmatmul.mubr.f32.gmra.mxu0 %v697
    %v765 = vpop.f32.mrf.mxu0
    %v766 = vadd.f32 0.0, %v765
    %v767 = vpop.f32.mrf.mxu0
    %768 = vdwg.mxu0
    %v770 = vsel %vm695, %v693, 0
    %772 = vmatprep.subr.mxu0 0.0
    %773 = vmatpush1.msra.mxu0 0.0
    %774 = vmatprep.subr.mxu0 0.0
    %775 = vmatpush1.msra.mxu0 0.0
    %776 = vmatprep.subr.mxu0 0.0
    %777 = vmatpush1.msra.mxu0 0.0
    %778 = vmatprep.subr.mxu0 0.0
    %779 = vmatpush1.msra.mxu0 0.0
    %780 = vmatprep.subr.mxu0 0.0
    %781 = vmatpush1.msra.mxu0 0.0
    %782 = vmatprep.subr.mxu0 0.0
    %783 = vmatpush1.msra.mxu0 0.0
    %784 = vmatprep.subr.mxu0 0.0
    %785 = vmatpush1.msra.mxu0 0.0
    %786 = vmatprep.subr.mxu0 0.0
    %787 = vmatpush1.msra.mxu0 0.0
    %788 = vmatprep.subr.mxu0 0.0
    %789 = vmatpush1.msra.mxu0 0.0
    %790 = vmatprep.subr.mxu0 0.0
    %791 = vmatpush1.msra.mxu0 0.0
    %792 = vmatprep.subr.mxu0 0.0
    %793 = vmatpush1.msra.mxu0 0.0
    %794 = vmatprep.subr.mxu0 0.0
    %795 = vmatpush1.msra.mxu0 0.0
    %796 = vmatprep.subr.mxu0 0.0
    %797 = vmatpush1.msra.mxu0 0.0
    %798 = vmatprep.subr.mxu0 0.0
    %799 = vmatpush1.msra.mxu0 0.0
    %800 = vmatprep.subr.mxu0 0.0
    %801 = vmatpush1.msra.mxu0 0.0
    %802 = vmatprep.subr.mxu0 0.0
    %803 = vmatpush1.msra.mxu0 %v694
    %804 = vmatprep.subr.mxu0 0.0
    %805 = vmatpush2.msra.mxu0 0.0
    %806 = vmatprep.subr.mxu0 0.0
    %807 = vmatpush2.msra.mxu0 0.0
    %808 = vmatprep.subr.mxu0 0.0
    %809 = vmatpush2.msra.mxu0 0.0
    %810 = vmatprep.subr.mxu0 0.0
    %811 = vmatpush2.msra.mxu0 0.0
    %812 = vmatprep.subr.mxu0 0.0
    %813 = vmatpush2.msra.mxu0 0.0
    %814 = vmatprep.subr.mxu0 0.0
    %815 = vmatpush2.msra.mxu0 0.0
    %816 = vmatprep.subr.mxu0 0.0
    %817 = vmatpush2.msra.mxu0 0.0
    %818 = vmatprep.subr.mxu0 0.0
    %819 = vmatpush2.msra.mxu0 0.0
    %820 = vmatprep.subr.mxu0 0.0
    %821 = vmatpush2.msra.mxu0 0.0
    %822 = vmatprep.subr.mxu0 0.0
    %823 = vmatpush2.msra.mxu0 0.0
    %824 = vmatprep.subr.mxu0 0.0
    %825 = vmatpush2.msra.mxu0 0.0
    %826 = vmatprep.subr.mxu0 0.0
    %827 = vmatpush2.msra.mxu0 0.0
    %828 = vmatprep.subr.mxu0 0.0
    %829 = vmatpush2.msra.mxu0 0.0
    %830 = vmatprep.subr.mxu0 0.0
    %831 = vmatpush2.msra.mxu0 0.0
    %832 = vmatprep.subr.mxu0 0.0
    %833 = vmatpush2.msra.mxu0 0.0
    %834 = vmatprep.subr.mxu0 0.0
    %835 = vmatpush2.msra.mxu0 0.0
    %836 = vmatprep.mubr.f32.mxu0 0.0
    %837 = vmatmul.mubr.f32.gmra.mxu0 %v770
    %v838 = vpop.f32.mrf.mxu0
    %v839 = vadd.f32 0.0, %v838
    %v840 = vpop.f32.mrf.mxu0
    %841 = vdwg.mxu0
    %v842 = vlaneseq
    %v843 = vshrl.u32 %v842, 7
    %v844 = vsub.s32 0, %v843
    %v845 = vrot.slane %v766, %v844
    %v846 = vsub.f32 %v502, %v845
    %v847 = vsub.f32 %v504, %v845
    %v848 = vsub.f32 %v506, %v845
    %v849 = vsub.f32 %v508, %v845
    %v850 = vlaneseq
    %v851 = vshrl.u32 %v850, 7
    %v852 = vsub.s32 0, %v851
    %v853 = vrot.slane %v839, %v852
    %v854 = vmul.f32 %v846, %v853
    %v855 = vmul.f32 %v847, %v853
    %v856 = vmul.f32 %v848, %v853
    %v857 = vmul.f32 %v849, %v853
    %v858 = vld [vmem:[%s7] sm:$0x1]
    %v860 = vlaneseq
    %v861 = vshrl.u32 %v860, 7
    %v862 = vsub.s32 0, %v861
    %v863 = vrot.slane %v858, %v862
    %v865 = vmul.f32 %v854, %v863
    %v866 = vmul.f32 %v855, %v863
    %v867 = vmul.f32 %v856, %v863
    %v868 = vmul.f32 %v857, %v863
    %v869 = vld [vmem:[%s8] sm:$0x1]
    %v871 = vlaneseq
    %v872 = vshrl.u32 %v871, 7
    %v873 = vsub.s32 0, %v872
    %v874 = vrot.slane %v869, %v873
    %v876 = vadd.f32 %v865, %v874
    %v877 = vadd.f32 %v866, %v874
    %v878 = vadd.f32 %v867, %v874
    %v879 = vadd.f32 %v868, %v874
    %v880 = vmax.f32 %v876, 0.0
    %v881 = vmax.f32 %v877, 0.0
    %v882 = vmax.f32 %v878, 0.0
    %v883 = vmax.f32 %v879, 0.0
    %v884 = vpack.c.bf16 %v881, %v880
    %v885 = vpack.c.bf16 %v883, %v882
    %v886 = vld [vmem:[#allocation2] sm:$0xff]
    %v887 = vld [vmem:[#allocation2 + $0x8] sm:$0xf]
    %v888 = vld [vmem:[#allocation2 + $0xc] sm:$0xff]
    %v889 = vld [vmem:[#allocation2 + $0x14] sm:$0xf]
    %v890 = vld [vmem:[#allocation2 + $0x18] sm:$0xff]
    %v891 = vld [vmem:[#allocation2 + $0x20] sm:$0xf]
    %v892 = vld [vmem:[#allocation2 + $0x24] sm:$0xff]
    %v893 = vld [vmem:[#allocation2 + $0x2c] sm:$0xf]
    %v894 = vld [vmem:[#allocation2 + $0x30] sm:$0xff]
    %v895 = vld [vmem:[#allocation2 + $0x38] sm:$0xf]
    %v896 = vld [vmem:[#allocation2 + $0x3c] sm:$0xff]
    %v897 = vld [vmem:[#allocation2 + $0x44] sm:$0xf]
    %v898 = vld [vmem:[#allocation2 + $0x48] sm:$0xff]
    %v899 = vld [vmem:[#allocation2 + $0x50] sm:$0xf]
    %v900 = vld [vmem:[#allocation2 + $0x54] sm:$0xff]
    %v901 = vld [vmem:[#allocation2 + $0x5c] sm:$0xf]
    %v902 = vld [vmem:[#allocation2 + $0x60] sm:$0xff]
    %v903 = vld [vmem:[#allocation2 + $0x68] sm:$0xf]
    %v904 = vld [vmem:[#allocation2 + $0x6c] sm:$0xff]
    %v905 = vld [vmem:[#allocation2 + $0x74] sm:$0xf]
    %v906 = vld [vmem:[#allocation2 + $0x78] sm:$0xff]
    %v907 = vld [vmem:[#allocation2 + $0x80] sm:$0xf]
    %v908 = vld [vmem:[#allocation2 + $0x84] sm:$0xff]
    %v909 = vld [vmem:[#allocation2 + $0x8c] sm:$0xf]
    %v910 = vld [vmem:[#allocation2 + $0x90] sm:$0xff]
    %v911 = vld [vmem:[#allocation2 + $0x98] sm:$0xf]
    %v912 = vld [vmem:[#allocation2 + $0x9c] sm:$0xff]
    %v913 = vld [vmem:[#allocation2 + $0xa4] sm:$0xf]
    %v914 = vld [vmem:[#allocation2 + $0xa8] sm:$0xff]
    %v915 = vld [vmem:[#allocation2 + $0xb0] sm:$0xf]
    %v916 = vld [vmem:[#allocation2 + $0xb4] sm:$0xff]
    %v917 = vld [vmem:[#allocation2 + $0xbc] sm:$0xf]
    %v950 = vunpack.c.l.b16 %v886
    %v951 = vunpack.c.h.b16 %v886
    %v952 = vunpack.c.l.b16 %v887
    %v953 = vunpack.c.l.b16 %v888
    %v954 = vunpack.c.h.b16 %v888
    %v955 = vunpack.c.l.b16 %v889
    %v956 = vunpack.c.l.b16 %v890
    %v957 = vunpack.c.h.b16 %v890
    %v958 = vunpack.c.l.b16 %v891
    %v959 = vunpack.c.l.b16 %v892
    %v960 = vunpack.c.h.b16 %v892
    %v961 = vunpack.c.l.b16 %v893
    %v962 = vunpack.c.l.b16 %v894
    %v963 = vunpack.c.h.b16 %v894
    %v964 = vunpack.c.l.b16 %v895
    %v965 = vunpack.c.l.b16 %v896
    %v966 = vunpack.c.h.b16 %v896
    %v967 = vunpack.c.l.b16 %v897
    %v968 = vunpack.c.l.b16 %v898
    %v969 = vunpack.c.h.b16 %v898
    %v970 = vunpack.c.l.b16 %v899
    %v971 = vunpack.c.l.b16 %v900
    %v972 = vunpack.c.h.b16 %v900
    %v973 = vunpack.c.l.b16 %v901
    %v974 = vunpack.c.l.b16 %v902
    %v975 = vunpack.c.h.b16 %v902
    %v976 = vunpack.c.l.b16 %v903
    %v977 = vunpack.c.l.b16 %v904
    %v978 = vunpack.c.h.b16 %v904
    %v979 = vunpack.c.l.b16 %v905
    %v980 = vunpack.c.l.b16 %v906
    %v981 = vunpack.c.h.b16 %v906
    %v982 = vunpack.c.l.b16 %v907
    %v983 = vunpack.c.l.b16 %v908
    %v984 = vunpack.c.h.b16 %v908
    %v985 = vunpack.c.l.b16 %v909
    %v986 = vunpack.c.l.b16 %v910
    %v987 = vunpack.c.h.b16 %v910
    %v988 = vunpack.c.l.b16 %v911
    %v989 = vunpack.c.l.b16 %v912
    %v990 = vunpack.c.h.b16 %v912
    %v991 = vunpack.c.l.b16 %v913
    %v992 = vunpack.c.l.b16 %v914
    %v993 = vunpack.c.h.b16 %v914
    %v994 = vunpack.c.l.b16 %v915
    %v995 = vunpack.c.l.b16 %v916
    %v996 = vunpack.c.h.b16 %v916
    %v997 = vunpack.c.l.b16 %v917
    %v998 = vpack.c.b16 %v953, %v950
    %v999 = vpack.c.b16 %v954, %v951
    %v1000 = vpack.c.b16 %v955, %v952
    %v1001 = vpack.c.b16 %v959, %v956
    %v1002 = vpack.c.b16 %v960, %v957
    %v1003 = vpack.c.b16 %v961, %v958
    %v1004 = vpack.c.b16 %v965, %v962
    %v1005 = vpack.c.b16 %v966, %v963
    %v1006 = vpack.c.b16 %v967, %v964
    %v1007 = vpack.c.b16 %v971, %v968
    %v1008 = vpack.c.b16 %v972, %v969
    %v1009 = vpack.c.b16 %v973, %v970
    %v1010 = vpack.c.b16 %v977, %v974
    %v1011 = vpack.c.b16 %v978, %v975
    %v1012 = vpack.c.b16 %v979, %v976
    %v1013 = vpack.c.b16 %v983, %v980
    %v1014 = vpack.c.b16 %v984, %v981
    %v1015 = vpack.c.b16 %v985, %v982
    %v1016 = vpack.c.b16 %v989, %v986
    %v1017 = vpack.c.b16 %v990, %v987
    %v1018 = vpack.c.b16 %v991, %v988
    %v1019 = vpack.c.b16 %v995, %v992
    %v1020 = vpack.c.b16 %v996, %v993
    %v1021 = vpack.c.b16 %v997, %v994
    %1046 = vmatprep.subr.bf16.mxu0 %v1020
    %1047 = vmatpush1.bf16.msra.mxu0 %v1019
    %1048 = vmatprep.subr.bf16.mxu0 %v1017
    %1049 = vmatpush1.bf16.msra.mxu0 %v1016
    %1050 = vmatprep.subr.bf16.mxu0 %v1014
    %1051 = vmatpush1.bf16.msra.mxu0 %v1013
    %1052 = vmatprep.subr.bf16.mxu0 %v1011
    %1053 = vmatpush1.bf16.msra.mxu0 %v1010
    %1054 = vmatprep.subr.bf16.mxu0 %v1008
    %1055 = vmatpush1.bf16.msra.mxu0 %v1007
    %1056 = vmatprep.subr.bf16.mxu0 %v1005
    %1057 = vmatpush1.bf16.msra.mxu0 %v1004
    %1058 = vmatprep.subr.bf16.mxu0 %v1002
    %1059 = vmatpush1.bf16.msra.mxu0 %v1001
    %1060 = vmatprep.subr.bf16.mxu0 %v999
    %1061 = vmatpush1.bf16.msra.mxu0 %v998
    %1062 = vmatprep.subr.bf16.mxu0 0
    %1063 = vmatpush2.bf16.msra.mxu0 0
    %1064 = vmatprep.subr.bf16.mxu0 0
    %1065 = vmatpush2.bf16.msra.mxu0 0
    %1066 = vmatprep.subr.bf16.mxu0 0
    %1067 = vmatpush2.bf16.msra.mxu0 0
    %1068 = vmatprep.subr.bf16.mxu0 0
    %1069 = vmatpush2.bf16.msra.mxu0 0
    %1070 = vmatprep.subr.bf16.mxu0 0
    %1071 = vmatpush2.bf16.msra.mxu0 0
    %1072 = vmatprep.subr.bf16.mxu0 0
    %1073 = vmatpush2.bf16.msra.mxu0 0
    %1074 = vmatprep.subr.bf16.mxu0 0
    %1075 = vmatpush2.bf16.msra.mxu0 0
    %1076 = vmatprep.subr.bf16.mxu0 0
    %1077 = vmatpush2.bf16.msra.mxu0 0
    %1078 = vmatprep.mubr.bf16.mxu0 0
    %1079 = vmatmul.mubr.bf16.gmra.mxu0 %v884
    %v1080 = vpop.f32.mrf.mxu0
    %v1081 = vadd.f32 0.0, %v1080
    %v1082 = vpop.f32.mrf.mxu0
    %v1083 = vadd.f32 0.0, %v1082
    %v1084 = vpop.f32.mrf.mxu0
    %v1085 = vadd.f32 0.0, %v1084
    %v1086 = vpop.f32.mrf.mxu0
    %v1087 = vadd.f32 0.0, %v1086
    %1088 = vmatprep.mubr.bf16.mxu0 0
    %1089 = vmatmul.mubr.bf16.gmra.mxu0 %v885
    %v1090 = vpop.f32.mrf.mxu0
    %v1091 = vadd.f32 0.0, %v1090
    %v1092 = vpop.f32.mrf.mxu0
    %v1093 = vadd.f32 0.0, %v1092
    %v1094 = vpop.f32.mrf.mxu0
    %v1095 = vadd.f32 0.0, %v1094
    %v1096 = vpop.f32.mrf.mxu0
    %v1097 = vadd.f32 0.0, %v1096
    %1098 = vdwg.mxu0
    %1099 = vmatprep.subr.bf16.mxu0 0
    %1100 = vmatpush1.bf16.msra.mxu0 %v1021
    %1101 = vmatprep.subr.bf16.mxu0 0
    %1102 = vmatpush1.bf16.msra.mxu0 %v1018
    %1103 = vmatprep.subr.bf16.mxu0 0
    %1104 = vmatpush1.bf16.msra.mxu0 %v1015
    %1105 = vmatprep.subr.bf16.mxu0 0
    %1106 = vmatpush1.bf16.msra.mxu0 %v1012
    %1107 = vmatprep.subr.bf16.mxu0 0
    %1108 = vmatpush1.bf16.msra.mxu0 %v1009
    %1109 = vmatprep.subr.bf16.mxu0 0
    %1110 = vmatpush1.bf16.msra.mxu0 %v1006
    %1111 = vmatprep.subr.bf16.mxu0 0
    %1112 = vmatpush1.bf16.msra.mxu0 %v1003
    %1113 = vmatprep.subr.bf16.mxu0 0
    %1114 = vmatpush1.bf16.msra.mxu0 %v1000
    %1115 = vmatprep.subr.bf16.mxu0 0
    %1116 = vmatpush2.bf16.msra.mxu0 0
    %1117 = vmatprep.subr.bf16.mxu0 0
    %1118 = vmatpush2.bf16.msra.mxu0 0
    %1119 = vmatprep.subr.bf16.mxu0 0
    %1120 = vmatpush2.bf16.msra.mxu0 0
    %1121 = vmatprep.subr.bf16.mxu0 0
    %1122 = vmatpush2.bf16.msra.mxu0 0
    %1123 = vmatprep.subr.bf16.mxu0 0
    %1124 = vmatpush2.bf16.msra.mxu0 0
    %1125 = vmatprep.subr.bf16.mxu0 0
    %1126 = vmatpush2.bf16.msra.mxu0 0
    %1127 = vmatprep.subr.bf16.mxu0 0
    %1128 = vmatpush2.bf16.msra.mxu0 0
    %1129 = vmatprep.subr.bf16.mxu0 0
    %1130 = vmatpush2.bf16.msra.mxu0 0
    %1131 = vmatprep.mubr.bf16.mxu0 0
    %1132 = vmatmul.mubr.bf16.gmra.mxu0 %v884
    %v1133 = vpop.f32.mrf.mxu0
    %v1134 = vadd.f32 0.0, %v1133
    %v1135 = vpop.f32.mrf.mxu0
    %v1136 = vpop.f32.mrf.mxu0
    %v1137 = vadd.f32 0.0, %v1136
    %v1138 = vpop.f32.mrf.mxu0
    %1139 = vmatprep.mubr.bf16.mxu0 0
    %1140 = vmatmul.mubr.bf16.gmra.mxu0 %v885
    %v1141 = vpop.f32.mrf.mxu0
    %v1142 = vadd.f32 0.0, %v1141
    %v1143 = vpop.f32.mrf.mxu0
    %v1144 = vpop.f32.mrf.mxu0
    %v1145 = vadd.f32 0.0, %v1144
    %v1146 = vpop.f32.mrf.mxu0
    %1147 = vdwg.mxu0
    %v1148 = vld [vmem:[#allocation5] sm:$0xff]
    %v1149 = vld [vmem:[#allocation5 + $0x8] sm:$0xff]
    %v1150 = vld [vmem:[#allocation5 + $0x10] sm:$0xff]
    %v1151 = vld [vmem:[#allocation5 + $0x18] sm:$0xff]
    %vm1152 = vcmask 261120
    %v1154 = vsel %vm1152, %v1148, 0
    %v1157 = vsel %vm1152, %v1149, 0
    %v1160 = vsel %vm1152, %v1150, 0
    %v1163 = vsel %vm1152, %v1151, 0
    %1165 = vmatprep.subr.mxu0 0.0
    %1166 = vmatpush1.msra.mxu0 0.0
    %1167 = vmatprep.subr.mxu0 0.0
    %1168 = vmatpush1.msra.mxu0 0.0
    %1169 = vmatprep.subr.mxu0 0.0
    %1170 = vmatpush1.msra.mxu0 0.0
    %1171 = vmatprep.subr.mxu0 0.0
    %1172 = vmatpush1.msra.mxu0 0.0
    %1173 = vmatprep.subr.mxu0 0.0
    %1174 = vmatpush1.msra.mxu0 0.0
    %1175 = vmatprep.subr.mxu0 0.0
    %1176 = vmatpush1.msra.mxu0 0.0
    %1177 = vmatprep.subr.mxu0 0.0
    %1178 = vmatpush1.msra.mxu0 0.0
    %1179 = vmatprep.subr.mxu0 0.0
    %1180 = vmatpush1.msra.mxu0 0.0
    %1181 = vmatprep.subr.mxu0 0.0
    %1182 = vmatpush1.msra.mxu0 0.0
    %1183 = vmatprep.subr.mxu0 0.0
    %1184 = vmatpush1.msra.mxu0 0.0
    %1185 = vmatprep.subr.mxu0 0.0
    %1186 = vmatpush1.msra.mxu0 0.0
    %1187 = vmatprep.subr.mxu0 0.0
    %1188 = vmatpush1.msra.mxu0 0.0
    %1189 = vmatprep.subr.mxu0 0.0
    %1190 = vmatpush1.msra.mxu0 %v1095
    %1191 = vmatprep.subr.mxu0 0.0
    %1192 = vmatpush1.msra.mxu0 %v1091
    %1193 = vmatprep.subr.mxu0 0.0
    %1194 = vmatpush1.msra.mxu0 %v1085
    %1195 = vmatprep.subr.mxu0 0.0
    %1196 = vmatpush1.msra.mxu0 %v1081
    %1197 = vmatprep.subr.mxu0 0.0
    %1198 = vmatpush2.msra.mxu0 0.0
    %1199 = vmatprep.subr.mxu0 0.0
    %1200 = vmatpush2.msra.mxu0 0.0
    %1201 = vmatprep.subr.mxu0 0.0
    %1202 = vmatpush2.msra.mxu0 0.0
    %1203 = vmatprep.subr.mxu0 0.0
    %1204 = vmatpush2.msra.mxu0 0.0
    %1205 = vmatprep.subr.mxu0 0.0
    %1206 = vmatpush2.msra.mxu0 0.0
    %1207 = vmatprep.subr.mxu0 0.0
    %1208 = vmatpush2.msra.mxu0 0.0
    %1209 = vmatprep.subr.mxu0 0.0
    %1210 = vmatpush2.msra.mxu0 0.0
    %1211 = vmatprep.subr.mxu0 0.0
    %1212 = vmatpush2.msra.mxu0 0.0
    %1213 = vmatprep.subr.mxu0 0.0
    %1214 = vmatpush2.msra.mxu0 0.0
    %1215 = vmatprep.subr.mxu0 0.0
    %1216 = vmatpush2.msra.mxu0 0.0
    %1217 = vmatprep.subr.mxu0 0.0
    %1218 = vmatpush2.msra.mxu0 0.0
    %1219 = vmatprep.subr.mxu0 0.0
    %1220 = vmatpush2.msra.mxu0 0.0
    %1221 = vmatprep.subr.mxu0 0.0
    %1222 = vmatpush2.msra.mxu0 0.0
    %1223 = vmatprep.subr.mxu0 0.0
    %1224 = vmatpush2.msra.mxu0 0.0
    %1225 = vmatprep.subr.mxu0 0.0
    %1226 = vmatpush2.msra.mxu0 0.0
    %1227 = vmatprep.subr.mxu0 0.0
    %1228 = vmatpush2.msra.mxu0 0.0
    %1229 = vmatprep.mubr.f32.mxu0 0.0
    %1230 = vmatmul.mubr.f32.gmra.mxu0 %v1154
    %v1231 = vpop.f32.mrf.mxu0
    %v1232 = vadd.f32 0.0, %v1231
    %v1233 = vpop.f32.mrf.mxu0
    %1234 = vmatprep.mubr.f32.mxu0 0.0
    %1235 = vmatmul.mubr.f32.gmra.mxu0 %v1157
    %v1236 = vpop.f32.mrf.mxu0
    %v1237 = vadd.f32 0.0, %v1236
    %v1238 = vpop.f32.mrf.mxu0
    %1239 = vmatprep.mubr.f32.mxu0 0.0
    %1240 = vmatmul.mubr.f32.gmra.mxu0 %v1160
    %v1241 = vpop.f32.mrf.mxu0
    %v1242 = vadd.f32 0.0, %v1241
    %v1243 = vpop.f32.mrf.mxu0
    %1244 = vmatprep.mubr.f32.mxu0 0.0
    %1245 = vmatmul.mubr.f32.gmra.mxu0 %v1163
    %v1246 = vpop.f32.mrf.mxu0
    %v1247 = vadd.f32 0.0, %v1246
    %v1248 = vpop.f32.mrf.mxu0
    %1249 = vdwg.mxu0
    %v1250 = vadd.f32 %v1083, %v1232
    %v1251 = vadd.f32 %v1087, %v1237
    %v1252 = vadd.f32 %v1093, %v1242
    %v1253 = vadd.f32 %v1097, %v1247
    %v1254 = vld [vmem:[#allocation7] sm:$0xff]
    %v1255 = vld [vmem:[#allocation7 + $0x8] sm:$0xff]
    %v1256 = vld [vmem:[#allocation7 + $0x10] sm:$0xff]
    %v1257 = vld [vmem:[#allocation7 + $0x18] sm:$0xff]
    %v1259 = vsel %vm1152, %v1254, 0
    %v1262 = vsel %vm1152, %v1255, 0
    %v1265 = vsel %vm1152, %v1256, 0
    %v1268 = vsel %vm1152, %v1257, 0
    %1270 = vmatprep.subr.mxu0 0.0
    %1271 = vmatpush1.msra.mxu0 0.0
    %1272 = vmatprep.subr.mxu0 0.0
    %1273 = vmatpush1.msra.mxu0 0.0
    %1274 = vmatprep.subr.mxu0 0.0
    %1275 = vmatpush1.msra.mxu0 0.0
    %1276 = vmatprep.subr.mxu0 0.0
    %1277 = vmatpush1.msra.mxu0 0.0
    %1278 = vmatprep.subr.mxu0 0.0
    %1279 = vmatpush1.msra.mxu0 0.0
    %1280 = vmatprep.subr.mxu0 0.0
    %1281 = vmatpush1.msra.mxu0 0.0
    %1282 = vmatprep.subr.mxu0 0.0
    %1283 = vmatpush1.msra.mxu0 0.0
    %1284 = vmatprep.subr.mxu0 0.0
    %1285 = vmatpush1.msra.mxu0 0.0
    %1286 = vmatprep.subr.mxu0 0.0
    %1287 = vmatpush1.msra.mxu0 0.0
    %1288 = vmatprep.subr.mxu0 0.0
    %1289 = vmatpush1.msra.mxu0 0.0
    %1290 = vmatprep.subr.mxu0 0.0
    %1291 = vmatpush1.msra.mxu0 0.0
    %1292 = vmatprep.subr.mxu0 0.0
    %1293 = vmatpush1.msra.mxu0 0.0
    %1294 = vmatprep.subr.mxu0 0.0
    %1295 = vmatpush1.msra.mxu0 %v1145
    %1296 = vmatprep.subr.mxu0 0.0
    %1297 = vmatpush1.msra.mxu0 %v1142
    %1298 = vmatprep.subr.mxu0 0.0
    %1299 = vmatpush1.msra.mxu0 %v1137
    %1300 = vmatprep.subr.mxu0 0.0
    %1301 = vmatpush1.msra.mxu0 %v1134
    %1302 = vmatprep.subr.mxu0 0.0
    %1303 = vmatpush2.msra.mxu0 0.0
    %1304 = vmatprep.subr.mxu0 0.0
    %1305 = vmatpush2.msra.mxu0 0.0
    %1306 = vmatprep.subr.mxu0 0.0
    %1307 = vmatpush2.msra.mxu0 0.0
    %1308 = vmatprep.subr.mxu0 0.0
    %1309 = vmatpush2.msra.mxu0 0.0
    %1310 = vmatprep.subr.mxu0 0.0
    %1311 = vmatpush2.msra.mxu0 0.0
    %1312 = vmatprep.subr.mxu0 0.0
    %1313 = vmatpush2.msra.mxu0 0.0
    %1314 = vmatprep.subr.mxu0 0.0
    %1315 = vmatpush2.msra.mxu0 0.0
    %1316 = vmatprep.subr.mxu0 0.0
    %1317 = vmatpush2.msra.mxu0 0.0
    %1318 = vmatprep.subr.mxu0 0.0
    %1319 = vmatpush2.msra.mxu0 0.0
    %1320 = vmatprep.subr.mxu0 0.0
    %1321 = vmatpush2.msra.mxu0 0.0
    %1322 = vmatprep.subr.mxu0 0.0
    %1323 = vmatpush2.msra.mxu0 0.0
    %1324 = vmatprep.subr.mxu0 0.0
    %1325 = vmatpush2.msra.mxu0 0.0
    %1326 = vmatprep.subr.mxu0 0.0
    %1327 = vmatpush2.msra.mxu0 0.0
    %1328 = vmatprep.subr.mxu0 0.0
    %1329 = vmatpush2.msra.mxu0 0.0
    %1330 = vmatprep.subr.mxu0 0.0
    %1331 = vmatpush2.msra.mxu0 0.0
    %1332 = vmatprep.subr.mxu0 0.0
    %1333 = vmatpush2.msra.mxu0 0.0
    %1334 = vmatprep.mubr.f32.mxu0 0.0
    %1335 = vmatmul.mubr.f32.gmra.mxu0 %v1259
    %v1336 = vpop.f32.mrf.mxu0
    %v1337 = vadd.f32 0.0, %v1336
    %v1338 = vpop.f32.mrf.mxu0
    %1339 = vmatprep.mubr.f32.mxu0 0.0
    %1340 = vmatmul.mubr.f32.gmra.mxu0 %v1262
    %v1341 = vpop.f32.mrf.mxu0
    %v1342 = vadd.f32 0.0, %v1341
    %v1343 = vpop.f32.mrf.mxu0
    %1344 = vmatprep.mubr.f32.mxu0 0.0
    %1345 = vmatmul.mubr.f32.gmra.mxu0 %v1265
    %v1346 = vpop.f32.mrf.mxu0
    %v1347 = vadd.f32 0.0, %v1346
    %v1348 = vpop.f32.mrf.mxu0
    %1349 = vmatprep.mubr.f32.mxu0 0.0
    %1350 = vmatmul.mubr.f32.gmra.mxu0 %v1268
    %v1351 = vpop.f32.mrf.mxu0
    %v1352 = vadd.f32 0.0, %v1351
    %v1353 = vpop.f32.mrf.mxu0
    %1354 = vdwg.mxu0
    %v1355 = vadd.f32 %v1250, %v1337
    %v1356 = vadd.f32 %v1251, %v1342
    %v1357 = vadd.f32 %v1252, %v1347
    %v1358 = vadd.f32 %v1253, %v1352
    %v1359 = vadd.f32 %v1355, %v1356
    %v1360 = vadd.f32 %v1359, %v1357
    %v1361 = vadd.f32 %v1360, %v1358
    %v1362 = vrot.slane %v1361, 4
    %v1363 = vadd.f32 %v1361, %v1362
    %v1364 = vrot.slane %v1363, 2
    %v1365 = vadd.f32 %v1363, %v1364
    %v1366 = vrot.slane %v1365, 1
    %v1367 = vadd.f32 %v1365, %v1366
    %v1368 = vmul.f32 %v1355, %v1355
    %v1369 = vmul.f32 %v1356, %v1356
    %v1370 = vmul.f32 %v1357, %v1357
    %v1371 = vmul.f32 %v1358, %v1358
    %v1372 = vadd.f32 %v1368, %v1369
    %v1373 = vadd.f32 %v1372, %v1370
    %v1374 = vadd.f32 %v1373, %v1371
    %v1375 = vrot.slane %v1374, 4
    %v1376 = vadd.f32 %v1374, %v1375
    %v1377 = vrot.slane %v1376, 2
    %v1378 = vadd.f32 %v1376, %v1377
    %v1379 = vrot.slane %v1378, 1
    %v1380 = vadd.f32 %v1378, %v1379
    %1381 = vmatprep.subr.mxu0 0.0
    %1382 = vmatpush1.msra.mxu0 %v547
    %1383 = vmatprep.subr.mxu0 0.0
    %1384 = vmatpush1.msra.mxu0 %v546
    %1385 = vmatprep.subr.mxu0 0.0
    %1386 = vmatpush1.msra.mxu0 %v545
    %1387 = vmatprep.subr.mxu0 0.0
    %1388 = vmatpush1.msra.mxu0 %v544
    %1389 = vmatprep.subr.mxu0 0.0
    %1390 = vmatpush1.msra.mxu0 %v543
    %1391 = vmatprep.subr.mxu0 0.0
    %1392 = vmatpush1.msra.mxu0 %v542
    %1393 = vmatprep.subr.mxu0 0.0
    %1394 = vmatpush1.msra.mxu0 %v541
    %1395 = vmatprep.subr.mxu0 0.0
    %1396 = vmatpush1.msra.mxu0 %v540
    %1397 = vmatprep.subr.mxu0 0.0
    %1398 = vmatpush1.msra.mxu0 %v539
    %1399 = vmatprep.subr.mxu0 0.0
    %1400 = vmatpush1.msra.mxu0 %v538
    %1401 = vmatprep.subr.mxu0 0.0
    %1402 = vmatpush1.msra.mxu0 %v537
    %1403 = vmatprep.subr.mxu0 0.0
    %1404 = vmatpush1.msra.mxu0 %v536
    %1405 = vmatprep.subr.mxu0 0.0
    %1406 = vmatpush1.msra.mxu0 %v535
    %1407 = vmatprep.subr.mxu0 0.0
    %1408 = vmatpush1.msra.mxu0 %v534
    %1409 = vmatprep.subr.mxu0 0.0
    %1410 = vmatpush1.msra.mxu0 %v533
    %1411 = vmatprep.subr.mxu0 0.0
    %1412 = vmatpush1.msra.mxu0 %v532
    %1413 = vmatprep.subr.mxu0 0.0
    %1414 = vmatpush2.msra.mxu0 0.0
    %1415 = vmatprep.subr.mxu0 0.0
    %1416 = vmatpush2.msra.mxu0 0.0
    %1417 = vmatprep.subr.mxu0 0.0
    %1418 = vmatpush2.msra.mxu0 0.0
    %1419 = vmatprep.subr.mxu0 0.0
    %1420 = vmatpush2.msra.mxu0 0.0
    %1421 = vmatprep.subr.mxu0 0.0
    %1422 = vmatpush2.msra.mxu0 0.0
    %1423 = vmatprep.subr.mxu0 0.0
    %1424 = vmatpush2.msra.mxu0 0.0
    %1425 = vmatprep.subr.mxu0 0.0
    %1426 = vmatpush2.msra.mxu0 0.0
    %1427 = vmatprep.subr.mxu0 0.0
    %1428 = vmatpush2.msra.mxu0 0.0
    %1429 = vmatprep.subr.mxu0 0.0
    %1430 = vmatpush2.msra.mxu0 0.0
    %1431 = vmatprep.subr.mxu0 0.0
    %1432 = vmatpush2.msra.mxu0 0.0
    %1433 = vmatprep.subr.mxu0 0.0
    %1434 = vmatpush2.msra.mxu0 0.0
    %1435 = vmatprep.subr.mxu0 0.0
    %1436 = vmatpush2.msra.mxu0 0.0
    %1437 = vmatprep.subr.mxu0 0.0
    %1438 = vmatpush2.msra.mxu0 0.0
    %1439 = vmatprep.subr.mxu0 0.0
    %1440 = vmatpush2.msra.mxu0 0.0
    %1441 = vmatprep.subr.mxu0 0.0
    %1442 = vmatpush2.msra.mxu0 0.0
    %1443 = vmatprep.subr.mxu0 0.0
    %1444 = vmatpush2.msra.mxu0 0.0
    %1445 = vmatprep.mubr.f32.mxu0 0.0
    %1446 = vmatmul.mubr.f32.gmra.mxu0 %v1367
    %v1447 = vpop.f32.mrf.mxu0
    %v1448 = vadd.f32 0.0, %v1447
    %v1449 = vpop.f32.mrf.mxu0
    %1450 = vdwg.mxu0
    %v1451 = vmul.f32 %v1448, 0.001953125
    %1452 = vmatprep.subr.mxu0 0.0
    %1453 = vmatpush1.msra.mxu0 %v547
    %1454 = vmatprep.subr.mxu0 0.0
    %1455 = vmatpush1.msra.mxu0 %v546
    %1456 = vmatprep.subr.mxu0 0.0
    %1457 = vmatpush1.msra.mxu0 %v545
    %1458 = vmatprep.subr.mxu0 0.0
    %1459 = vmatpush1.msra.mxu0 %v544
    %1460 = vmatprep.subr.mxu0 0.0
    %1461 = vmatpush1.msra.mxu0 %v543
    %1462 = vmatprep.subr.mxu0 0.0
    %1463 = vmatpush1.msra.mxu0 %v542
    %1464 = vmatprep.subr.mxu0 0.0
    %1465 = vmatpush1.msra.mxu0 %v541
    %1466 = vmatprep.subr.mxu0 0.0
    %1467 = vmatpush1.msra.mxu0 %v540
    %1468 = vmatprep.subr.mxu0 0.0
    %1469 = vmatpush1.msra.mxu0 %v539
    %1470 = vmatprep.subr.mxu0 0.0
    %1471 = vmatpush1.msra.mxu0 %v538
    %1472 = vmatprep.subr.mxu0 0.0
    %1473 = vmatpush1.msra.mxu0 %v537
    %1474 = vmatprep.subr.mxu0 0.0
    %1475 = vmatpush1.msra.mxu0 %v536
    %1476 = vmatprep.subr.mxu0 0.0
    %1477 = vmatpush1.msra.mxu0 %v535
    %1478 = vmatprep.subr.mxu0 0.0
    %1479 = vmatpush1.msra.mxu0 %v534
    %1480 = vmatprep.subr.mxu0 0.0
    %1481 = vmatpush1.msra.mxu0 %v533
    %1482 = vmatprep.subr.mxu0 0.0
    %1483 = vmatpush1.msra.mxu0 %v532
    %1484 = vmatprep.subr.mxu0 0.0
    %1485 = vmatpush2.msra.mxu0 0.0
    %1486 = vmatprep.subr.mxu0 0.0
    %1487 = vmatpush2.msra.mxu0 0.0
    %1488 = vmatprep.subr.mxu0 0.0
    %1489 = vmatpush2.msra.mxu0 0.0
    %1490 = vmatprep.subr.mxu0 0.0
    %1491 = vmatpush2.msra.mxu0 0.0
    %1492 = vmatprep.subr.mxu0 0.0
    %1493 = vmatpush2.msra.mxu0 0.0
    %1494 = vmatprep.subr.mxu0 0.0
    %1495 = vmatpush2.msra.mxu0 0.0
    %1496 = vmatprep.subr.mxu0 0.0
    %1497 = vmatpush2.msra.mxu0 0.0
    %1498 = vmatprep.subr.mxu0 0.0
    %1499 = vmatpush2.msra.mxu0 0.0
    %1500 = vmatprep.subr.mxu0 0.0
    %1501 = vmatpush2.msra.mxu0 0.0
    %1502 = vmatprep.subr.mxu0 0.0
    %1503 = vmatpush2.msra.mxu0 0.0
    %1504 = vmatprep.subr.mxu0 0.0
    %1505 = vmatpush2.msra.mxu0 0.0
    %1506 = vmatprep.subr.mxu0 0.0
    %1507 = vmatpush2.msra.mxu0 0.0
    %1508 = vmatprep.subr.mxu0 0.0
    %1509 = vmatpush2.msra.mxu0 0.0
    %1510 = vmatprep.subr.mxu0 0.0
    %1511 = vmatpush2.msra.mxu0 0.0
    %1512 = vmatprep.subr.mxu0 0.0
    %1513 = vmatpush2.msra.mxu0 0.0
    %1514 = vmatprep.subr.mxu0 0.0
    %1515 = vmatpush2.msra.mxu0 0.0
    %1516 = vmatprep.mubr.f32.mxu0 0.0
    %1517 = vmatmul.mubr.f32.gmra.mxu0 %v1380
    %v1518 = vpop.f32.mrf.mxu0
    %v1519 = vadd.f32 0.0, %v1518
    %v1520 = vpop.f32.mrf.mxu0
    %1521 = vdwg.mxu0
    %v1522 = vmul.f32 %v1519, 0.001953125
    %v1523 = vmul.f32 %v1451, %v1451
    %v1524 = vsub.f32 %v1522, %v1523
    %v1525 = vadd.f32 %v1524, 1e-05
    %v1526 = vrsqrt.pop %v1525
    %v1528 = vsel %vm695, %v1451, 0
    %1530 = vmatprep.subr.mxu0 0.0
    %1531 = vmatpush1.msra.mxu0 0.0
    %1532 = vmatprep.subr.mxu0 0.0
    %1533 = vmatpush1.msra.mxu0 0.0
    %1534 = vmatprep.subr.mxu0 0.0
    %1535 = vmatpush1.msra.mxu0 0.0
    %1536 = vmatprep.subr.mxu0 0.0
    %1537 = vmatpush1.msra.mxu0 0.0
    %1538 = vmatprep.subr.mxu0 0.0
    %1539 = vmatpush1.msra.mxu0 0.0
    %1540 = vmatprep.subr.mxu0 0.0
    %1541 = vmatpush1.msra.mxu0 0.0
    %1542 = vmatprep.subr.mxu0 0.0
    %1543 = vmatpush1.msra.mxu0 0.0
    %1544 = vmatprep.subr.mxu0 0.0
    %1545 = vmatpush1.msra.mxu0 0.0
    %1546 = vmatprep.subr.mxu0 0.0
    %1547 = vmatpush1.msra.mxu0 0.0
    %1548 = vmatprep.subr.mxu0 0.0
    %1549 = vmatpush1.msra.mxu0 0.0
    %1550 = vmatprep.subr.mxu0 0.0
    %1551 = vmatpush1.msra.mxu0 0.0
    %1552 = vmatprep.subr.mxu0 0.0
    %1553 = vmatpush1.msra.mxu0 0.0
    %1554 = vmatprep.subr.mxu0 0.0
    %1555 = vmatpush1.msra.mxu0 0.0
    %1556 = vmatprep.subr.mxu0 0.0
    %1557 = vmatpush1.msra.mxu0 0.0
    %1558 = vmatprep.subr.mxu0 0.0
    %1559 = vmatpush1.msra.mxu0 0.0
    %1560 = vmatprep.subr.mxu0 0.0
    %1561 = vmatpush1.msra.mxu0 %v694
    %1562 = vmatprep.subr.mxu0 0.0
    %1563 = vmatpush2.msra.mxu0 0.0
    %1564 = vmatprep.subr.mxu0 0.0
    %1565 = vmatpush2.msra.mxu0 0.0
    %1566 = vmatprep.subr.mxu0 0.0
    %1567 = vmatpush2.msra.mxu0 0.0
    %1568 = vmatprep.subr.mxu0 0.0
    %1569 = vmatpush2.msra.mxu0 0.0
    %1570 = vmatprep.subr.mxu0 0.0
    %1571 = vmatpush2.msra.mxu0 0.0
    %1572 = vmatprep.subr.mxu0 0.0
    %1573 = vmatpush2.msra.mxu0 0.0
    %1574 = vmatprep.subr.mxu0 0.0
    %1575 = vmatpush2.msra.mxu0 0.0
    %1576 = vmatprep.subr.mxu0 0.0
    %1577 = vmatpush2.msra.mxu0 0.0
    %1578 = vmatprep.subr.mxu0 0.0
    %1579 = vmatpush2.msra.mxu0 0.0
    %1580 = vmatprep.subr.mxu0 0.0
    %1581 = vmatpush2.msra.mxu0 0.0
    %1582 = vmatprep.subr.mxu0 0.0
    %1583 = vmatpush2.msra.mxu0 0.0
    %1584 = vmatprep.subr.mxu0 0.0
    %1585 = vmatpush2.msra.mxu0 0.0
    %1586 = vmatprep.subr.mxu0 0.0
    %1587 = vmatpush2.msra.mxu0 0.0
    %1588 = vmatprep.subr.mxu0 0.0
    %1589 = vmatpush2.msra.mxu0 0.0
    %1590 = vmatprep.subr.mxu0 0.0
    %1591 = vmatpush2.msra.mxu0 0.0
    %1592 = vmatprep.subr.mxu0 0.0
    %1593 = vmatpush2.msra.mxu0 0.0
    %1594 = vmatprep.mubr.f32.mxu0 0.0
    %1595 = vmatmul.mubr.f32.gmra.mxu0 %v1528
    %v1596 = vpop.f32.mrf.mxu0
    %v1597 = vadd.f32 0.0, %v1596
    %v1598 = vpop.f32.mrf.mxu0
    %1599 = vdwg.mxu0
    %v1601 = vsel %vm695, %v1526, 0
    %1603 = vmatprep.subr.mxu0 0.0
    %1604 = vmatpush1.msra.mxu0 0.0
    %1605 = vmatprep.subr.mxu0 0.0
    %1606 = vmatpush1.msra.mxu0 0.0
    %1607 = vmatprep.subr.mxu0 0.0
    %1608 = vmatpush1.msra.mxu0 0.0
    %1609 = vmatprep.subr.mxu0 0.0
    %1610 = vmatpush1.msra.mxu0 0.0
    %1611 = vmatprep.subr.mxu0 0.0
    %1612 = vmatpush1.msra.mxu0 0.0
    %1613 = vmatprep.subr.mxu0 0.0
    %1614 = vmatpush1.msra.mxu0 0.0
    %1615 = vmatprep.subr.mxu0 0.0
    %1616 = vmatpush1.msra.mxu0 0.0
    %1617 = vmatprep.subr.mxu0 0.0
    %1618 = vmatpush1.msra.mxu0 0.0
    %1619 = vmatprep.subr.mxu0 0.0
    %1620 = vmatpush1.msra.mxu0 0.0
    %1621 = vmatprep.subr.mxu0 0.0
    %1622 = vmatpush1.msra.mxu0 0.0
    %1623 = vmatprep.subr.mxu0 0.0
    %1624 = vmatpush1.msra.mxu0 0.0
    %1625 = vmatprep.subr.mxu0 0.0
    %1626 = vmatpush1.msra.mxu0 0.0
    %1627 = vmatprep.subr.mxu0 0.0
    %1628 = vmatpush1.msra.mxu0 0.0
    %1629 = vmatprep.subr.mxu0 0.0
    %1630 = vmatpush1.msra.mxu0 0.0
    %1631 = vmatprep.subr.mxu0 0.0
    %1632 = vmatpush1.msra.mxu0 0.0
    %1633 = vmatprep.subr.mxu0 0.0
    %1634 = vmatpush1.msra.mxu0 %v694
    %1635 = vmatprep.subr.mxu0 0.0
    %1636 = vmatpush2.msra.mxu0 0.0
    %1637 = vmatprep.subr.mxu0 0.0
    %1638 = vmatpush2.msra.mxu0 0.0
    %1639 = vmatprep.subr.mxu0 0.0
    %1640 = vmatpush2.msra.mxu0 0.0
    %1641 = vmatprep.subr.mxu0 0.0
    %1642 = vmatpush2.msra.mxu0 0.0
    %1643 = vmatprep.subr.mxu0 0.0
    %1644 = vmatpush2.msra.mxu0 0.0
    %1645 = vmatprep.subr.mxu0 0.0
    %1646 = vmatpush2.msra.mxu0 0.0
    %1647 = vmatprep.subr.mxu0 0.0
    %1648 = vmatpush2.msra.mxu0 0.0
    %1649 = vmatprep.subr.mxu0 0.0
    %1650 = vmatpush2.msra.mxu0 0.0
    %1651 = vmatprep.subr.mxu0 0.0
    %1652 = vmatpush2.msra.mxu0 0.0
    %1653 = vmatprep.subr.mxu0 0.0
    %1654 = vmatpush2.msra.mxu0 0.0
    %1655 = vmatprep.subr.mxu0 0.0
    %1656 = vmatpush2.msra.mxu0 0.0
    %1657 = vmatprep.subr.mxu0 0.0
    %1658 = vmatpush2.msra.mxu0 0.0
    %1659 = vmatprep.subr.mxu0 0.0
    %1660 = vmatpush2.msra.mxu0 0.0
    %1661 = vmatprep.subr.mxu0 0.0
    %1662 = vmatpush2.msra.mxu0 0.0
    %1663 = vmatprep.subr.mxu0 0.0
    %1664 = vmatpush2.msra.mxu0 0.0
    %1665 = vmatprep.subr.mxu0 0.0
    %1666 = vmatpush2.msra.mxu0 0.0
    %1667 = vmatprep.mubr.f32.mxu0 0.0
    %1668 = vmatmul.mubr.f32.gmra.mxu0 %v1601
    %v1669 = vpop.f32.mrf.mxu0
    %v1670 = vadd.f32 0.0, %v1669
    %v1671 = vpop.f32.mrf.mxu0
    %1672 = vdwg.mxu0
    %v1673 = vlaneseq
    %v1674 = vshrl.u32 %v1673, 7
    %v1675 = vsub.s32 0, %v1674
    %v1676 = vrot.slane %v1597, %v1675
    %v1677 = vsub.f32 %v1355, %v1676
    %v1678 = vsub.f32 %v1356, %v1676
    %v1679 = vsub.f32 %v1357, %v1676
    %v1680 = vsub.f32 %v1358, %v1676
    %v1681 = vlaneseq
    %v1682 = vshrl.u32 %v1681, 7
    %v1683 = vsub.s32 0, %v1682
    %v1684 = vrot.slane %v1670, %v1683
    %v1685 = vmul.f32 %v1677, %v1684
    %v1686 = vmul.f32 %v1678, %v1684
    %v1687 = vmul.f32 %v1679, %v1684
    %v1688 = vmul.f32 %v1680, %v1684
    %v1689 = vld [vmem:[%s9] sm:$0x1]
    %v1691 = vlaneseq
    %v1692 = vshrl.u32 %v1691, 7
    %v1693 = vsub.s32 0, %v1692
    %v1694 = vrot.slane %v1689, %v1693
    %v1696 = vmul.f32 %v1685, %v1694
    %v1697 = vmul.f32 %v1686, %v1694
    %v1698 = vmul.f32 %v1687, %v1694
    %v1699 = vmul.f32 %v1688, %v1694
    %v1700 = vld [vmem:[%s10] sm:$0x1]
    %v1702 = vlaneseq
    %v1703 = vshrl.u32 %v1702, 7
    %v1704 = vsub.s32 0, %v1703
    %v1705 = vrot.slane %v1700, %v1704
    %v1707 = vadd.f32 %v1696, %v1705
    %v1708 = vadd.f32 %v1697, %v1705
    %v1709 = vadd.f32 %v1698, %v1705
    %v1710 = vadd.f32 %v1699, %v1705
    %v1711 = vadd.f32 %v1707, %v503
    %v1712 = vadd.f32 %v1708, %v505
    %v1713 = vadd.f32 %v1709, %v507
    %v1714 = vadd.f32 %v1710, %v509
    %v1715 = vmax.f32 %v1711, 0.0
    %v1716 = vmax.f32 %v1712, 0.0
    %v1717 = vmax.f32 %v1713, 0.0
    %v1718 = vmax.f32 %v1714, 0.0
    %1719 = vst [vmem:[#allocation10] sm:$0xff] %v1715
    %1720 = vst [vmem:[#allocation10 + $0x8] sm:$0xff] %v1716
    %1721 = vst [vmem:[#allocation10 + $0x10] sm:$0xff] %v1717
    %1722 = vst [vmem:[#allocation10 + $0x18] sm:$0xff] %v1718
    // Predicated region
    $region62: #{tpu_custom_call.1} parent=1 // pred_check
      _
    $region63: #{tpu_custom_call.1} parent=1 // pred_check_branch
      %1724 = sbr.rel (0) target = $region65
    $region64: #{tpu_custom_call.1} parent=1 // pred_region
      %s1726 = ssub.s32 512, 512
      %1727 = vsyncadd [#allocation4], %s1726
      %s1728 = sshll.u32 [#allocation10], 4
      %s1729 = int_to_ptr.vmem [resolvable:$true] %s1728
      %1734 = dma.vmem_to_hbm [thread:$0]  %s1729, 512, %s11, [#allocation4], 128, 128, 8
    $region65: #{tpu_custom_call.1} parent=1 // pred_fallthru
      _
    // Predicated region
    $region66: #{tpu_custom_call.1} parent=1 // pred_check
      _
    $region67: #{tpu_custom_call.1} parent=1 // pred_check_branch
      %1736 = sbr.rel (0) target = $region69
    $region68: #{tpu_custom_call.1} parent=1 // pred_region
      %1737 = dma.done [#allocation4], 512
    $region69: #{tpu_custom_call.1} parent=1 // pred_fallthru
      _
    %1738 = vsyncpa [#allocation3], 1
    %1739 = vsyncpa [#allocation6], 1
    %1740 = vsyncpa [#allocation9], 1
    %1741 = vsyncpa [#allocation4], 1

</llo_original>
